<compile_context>
chip_gen: v5e
topology: v5e:2x2
jax: 0.10.0
libtpu: 0.0.40
codegen_flags: <defaults>
</compile_context>

<pallas_src>
import functools
import math

import jax
import jax.numpy as jnp
from jax.experimental import pallas as pl
from jax.experimental.pallas import tpu as pltpu  # noqa: F401  (TPU backend)


# ------------------------- fused head Pallas kernel -------------------------

def _fused_head_kernel(cls2d_ref, f3d_ref,
                       enc_in_w_ref, enc_b_ref, w3d_ref,
                       head_w_ref, head_b_ref,
                       pred_w_ref, pred_b_ref,
                       out_ref):
    """All pyramid levels in one invocation: channel encoders -> fused
    (cls|reg) head stack -> packed [conf | cls | reg | pad] predictions."""
    f32, bf16 = jnp.float32, jnp.bfloat16
    L = cls2d_ref.shape[0]
    D = enc_b_ref.shape[-1]
    nh = head_w_ref.shape[1]

    def silu(v):
        return v * jax.nn.sigmoid(v)          # f32 elementwise (EUP/VPU)

    def mm(a, w):                              # bf16 MXU inputs, f32 accumulate
        return jnp.dot(a.astype(bf16), w, preferred_element_type=f32)

    # feat_3d is identical across levels/encoders: hoist all its projections
    # into a single (M, C3d) x (C3d, L*2D) matmul.
    f3d_proj = mm(f3d_ref[...], w3d_ref[...])                      # (M, L*2D)

    for l in range(L):                         # static unroll, one grid step
        x2d = cls2d_ref[l]                                         # (M, C2d)
        f3d_c = f3d_proj[:, 2 * l * D:2 * l * D + D]
        f3d_r = f3d_proj[:, 2 * l * D + D:2 * (l + 1) * D]

        # cls channel encoder; reg channel encoder re-encodes the *encoded*
        # cls feature (faithful to the reference aggregate path).
        cls_f = silu(mm(x2d, enc_in_w_ref[0, l]) + f3d_c + enc_b_ref[0, l])
        reg_f = silu(mm(cls_f, enc_in_w_ref[1, l]) + f3d_r + enc_b_ref[1, l])

        # fused decoupled heads: block-diagonal (2D, 2D) weights on [cls|reg].
        x = jnp.concatenate([cls_f, reg_f], axis=-1)               # (M, 2D)
        for h in range(nh):
            x = silu(mm(x, head_w_ref[l, h]) + head_b_ref[l, h])

        # single stacked prediction matmul -> lane-dense packed output row.
        out_ref[l] = mm(x, pred_w_ref[l]) + pred_b_ref[l]


def run_fused_head(cls2d, f3d, wp):
    """cls2d: (L, M, C2d) f32; f3d: (M, C3d) f32; wp: packed weight slabs.

    Returns packed predictions (L, M, NP) f32, NP a multiple of 128.
    Single grid-less pallas_call: every tensor fits whole in VMEM.
    """
    L, M, _ = cls2d.shape
    NP = wp["pred_b"].shape[-1]
    return pl.pallas_call(
        _fused_head_kernel,
        out_shape=jax.ShapeDtypeStruct((L, M, NP), jnp.float32),
    )(cls2d, f3d,
      wp["enc_in_w"], wp["enc_b"], wp["w3d"],
      wp["head_w"], wp["head_b"], wp["pred_w"], wp["pred_b"])


# ------------------------------- JAX helpers ---------------------------------

def _silu(x):
    return x * jax.nn.sigmoid(x)


def conv1x1_silu(x, w, b):
    # TODO(synk): synthetic backbone stand-in (real build_backbone_2d/3d are external).
    return _silu(jnp.einsum("bhwc,cd->bhwd", x, w) + b)


def avg_pool_nhwc(x, k):
    """Non-overlapping k x k average pooling (== F.unfold(k, stride=k) + mean)."""
    if k == 1:
        return x
    B, H, W, C = x.shape
    return x.reshape(B, H // k, k, W // k, k, C).mean(axis=(2, 4))


def aggregate_features(feats, spatial_sizes):
    s3d = spatial_sizes[-1]
    return [avg_pool_nhwc(f, s // s3d) for f, s in zip(feats, spatial_sizes)]


def upsample_nearest(x, s):
    if s == 1:
        return x
    return jnp.repeat(jnp.repeat(x, s, axis=1), s, axis=2)


def generate_anchors(fmp_size, stride):
    fh, fw = fmp_size
    ay, ax = jnp.meshgrid(jnp.arange(fh), jnp.arange(fw), indexing="ij")
    anchor_xy = jnp.stack([ax, ay], axis=-1).astype(jnp.float32).reshape(-1, 2) + 0.5
    return anchor_xy * float(stride)


def decode_boxes(anchors, reg_pred, stride):
    ctr = anchors[None, :, :] + reg_pred[..., :2] * stride
    wh = jnp.exp(reg_pred[..., 2:]) * stride
    return jnp.concatenate([ctr - 0.5 * wh, ctr + 0.5 * wh], axis=-1)


# ------------------------------- model config --------------------------------

class ModelConfig:
    stride = (8, 16, 32)
    num_classes = 8
    head_dim = 32
    num_cls_heads = 2
    num_reg_heads = 2
    img_size = 64
    use_aggregate_feat = True
    # Synthetic backbone dims (bk_dim_2d[i] == head_dim so the reference's
    # aggregate-path quirk of re-encoding cls_feat is shape-consistent).
    bk_dim_2d = (32, 32, 32)
    bk_dim_3d = 32


def init_params(cfg, key):
    keys = iter(jax.random.split(key, 128))
    nl = len(cfg.stride)

    def w(kin, kout):
        return 0.05 * jax.random.normal(next(keys), (kin, kout), jnp.float32)

    def zeros(n):
        return jnp.zeros((n,), jnp.float32)

    bias_value = -math.log((1.0 - 0.01) / 0.01)  # init_yowo() prior bias

    p = {}
    # TODO(synk): real build_backbone_2d / build_backbone_3d are external; replaced
    # by deterministic avg-pool + 1x1-conv stand-ins with matching dims.
    p["bk3d_w"], p["bk3d_b"] = w(3, cfg.bk_dim_3d), zeros(cfg.bk_dim_3d)
    p["bk2d_cls_w"] = [w(3, d) for d in cfg.bk_dim_2d]
    p["bk2d_cls_b"] = [zeros(d) for d in cfg.bk_dim_2d]
    p["bk2d_reg_w"] = [w(3, d) for d in cfg.bk_dim_2d]
    p["bk2d_reg_b"] = [zeros(d) for d in cfg.bk_dim_2d]
    # channel encoders: Conv1x1(concat(feat2d, feat3d)) + SiLU
    p["cls_enc_w"] = [w(cfg.bk_dim_2d[i] + cfg.bk_dim_3d, cfg.head_dim) for i in range(nl)]
    p["cls_enc_b"] = [zeros(cfg.head_dim) for _ in range(nl)]
    p["reg_enc_w"] = [w(cfg.bk_dim_2d[i] + cfg.bk_dim_3d, cfg.head_dim) for i in range(nl)]
    p["reg_enc_b"] = [zeros(cfg.head_dim) for _ in range(nl)]
    # TODO(synk): build_head definition not provided; modeled as stacks of 1x1 conv + SiLU.
    p["cls_head"] = [[(w(cfg.head_dim, cfg.head_dim), zeros(cfg.head_dim))
                      for _ in range(cfg.num_cls_heads)] for _ in range(nl)]
    p["reg_head"] = [[(w(cfg.head_dim, cfg.head_dim), zeros(cfg.head_dim))
                      for _ in range(cfg.num_reg_heads)] for _ in range(nl)]
    p["conf_w"] = [w(cfg.head_dim, 1) for _ in range(nl)]
    p["conf_b"] = [jnp.full((1,), bias_value, jnp.float32) for _ in range(nl)]
    p["cls_w"] = [w(cfg.head_dim, cfg.num_classes) for _ in range(nl)]
    p["cls_b"] = [jnp.full((cfg.num_classes,), bias_value, jnp.float32) for _ in range(nl)]
    p["reg_w"] = [w(cfg.head_dim, 4) for _ in range(nl)]
    p["reg_b"] = [zeros(4) for _ in range(nl)]
    return p


def pack_head_weights(params, cfg):
    """Pack all head weights into a few stacked slabs for the fused kernel:
      - enc_in_w : (2, L, C2d, D)   bf16   [0]=cls enc (feat2d half), [1]=reg enc input half
      - enc_b    : (2, L, 1, D)     f32
      - w3d      : (C3d, L*2D)      bf16   feat_3d projection for every level/encoder
      - head_w   : (L, nh, 2D, 2D)  bf16   block-diag fused cls|reg head weights
      - head_b   : (L, nh, 1, 2D)   f32
      - pred_w   : (L, 2D, NP)      bf16   stacked conf/cls/reg 1x1 convs, lane-dense
      - pred_b   : (L, 1, NP)       f32
    Packed prediction columns: [0]=conf, [1:1+C]=cls, [1+C:1+C+4]=reg, rest 0.
    """
    L = len(cfg.stride)
    D = cfg.head_dim
    C = cfg.num_classes
    NP = ((1 + C + 4 + 127) // 128) * 128     # lane-dense, derived from C
    c2 = cfg.bk_dim_2d[0]
    bf16 = jnp.bfloat16

    if any(d != c2 for d in cfg.bk_dim_2d):
        raise ValueError("fused head kernel requires equal bk_dim_2d across levels")
    if cfg.use_aggregate_feat and c2 != D:
        raise ValueError(
            "aggregate path re-encodes the head_dim-wide cls feature through the reg "
            "channel encoder; this requires bk_dim_2d == head_dim")
    if cfg.num_cls_heads != cfg.num_reg_heads:
        raise ValueError("fused block-diagonal head stack requires num_cls_heads == num_reg_heads")

    def stack(lst):
        return jnp.stack(lst, axis=0)

    cls_enc_w = stack(params["cls_enc_w"])            # (L, C2d + C3d, D)
    reg_enc_w = stack(params["reg_enc_w"])

    enc_in_w = jnp.stack([cls_enc_w[:, :c2, :], reg_enc_w[:, :c2, :]], axis=0).astype(bf16)
    enc_b = jnp.stack([stack(params["cls_enc_b"]), stack(params["reg_enc_b"])],
                      axis=0)[:, :, None, :]

    w3d_cols = []
    for l in range(L):
        w3d_cols.append(cls_enc_w[l, c2:, :])
        w3d_cols.append(reg_enc_w[l, c2:, :])
    w3d = jnp.concatenate(w3d_cols, axis=-1).astype(bf16)          # (C3d, L*2D)

    nh = cfg.num_cls_heads
    head_w = jnp.zeros((L, nh, 2 * D, 2 * D), jnp.float32)
    head_b = jnp.zeros((L, nh, 1, 2 * D), jnp.float32)
    for l in range(L):
        for h in range(nh):
            cw, cb = params["cls_head"][l][h]
            rw, rb = params["reg_head"][l][h]
            head_w = head_w.at[l, h, :D, :D].set(cw).at[l, h, D:, D:].set(rw)
            head_b = head_b.at[l, h, 0, :D].set(cb).at[l, h, 0, D:].set(rb)
    head_w = head_w.astype(bf16)

    # conf/reg come from reg_feat (bottom rows), cls from cls_feat (top rows).
    pred_w = jnp.zeros((L, 2 * D, NP), jnp.float32)
    pred_w = pred_w.at[:, :D, 1:1 + C].set(stack(params["cls_w"]))
    pred_w = pred_w.at[:, D:, 0:1].set(stack(params["conf_w"]))
    pred_w = pred_w.at[:, D:, 1 + C:1 + C + 4].set(stack(params["reg_w"]))
    pred_b = jnp.zeros((L, 1, NP), jnp.float32)
    pred_b = pred_b.at[:, 0, 0].set(stack(params["conf_b"])[:, 0])
    pred_b = pred_b.at[:, 0, 1:1 + C].set(stack(params["cls_b"]))
    pred_b = pred_b.at[:, 0, 1 + C:1 + C + 4].set(stack(params["reg_b"]))
    pred_w = pred_w.astype(bf16)

    return {"enc_in_w": enc_in_w, "enc_b": enc_b, "w3d": w3d,
            "head_w": head_w, "head_b": head_b,
            "pred_w": pred_w, "pred_b": pred_b}


# --------------------------------- forward -----------------------------------

def yowo_forward(cfg, params, video_clips):
    """video_clips: (B, 3, T, H, W) float32 (same convention as PyTorch)."""
    B = video_clips.shape[0]
    strides = cfg.stride
    L = len(strides)
    C = cfg.num_classes
    spatial_sizes = [cfg.img_size // s for s in strides]
    s3d = spatial_sizes[-1]
    npred = 1 + C + 4

    # --- backbones (synthetic, deterministic stand-ins) ---
    key_nhwc = jnp.transpose(video_clips[:, :, -1], (0, 2, 3, 1))
    clip_nhwc = jnp.transpose(jnp.mean(video_clips, axis=2), (0, 2, 3, 1))
    feat_3d = conv1x1_silu(avg_pool_nhwc(clip_nhwc, strides[-1]),
                           params["bk3d_w"], params["bk3d_b"])
    cls_feats = [conv1x1_silu(avg_pool_nhwc(key_nhwc, s),
                              params["bk2d_cls_w"][i], params["bk2d_cls_b"][i])
                 for i, s in enumerate(strides)]

    all_conf, all_cls, all_box, all_anchors = [], [], [], []

    if cfg.use_aggregate_feat:
        # reg_feats are dead in the aggregate path (the reference overwrites the
        # reg feature with the re-encoded cls feature), so the 2D reg backbone
        # and its aggregation are skipped entirely.
        wp = pack_head_weights(params, cfg)
        cls_feats = aggregate_features(cls_feats, spatial_sizes)
        M = B * s3d * s3d
        cls2d = jnp.stack([f.reshape(M, -1) for f in cls_feats])   # (L, M, C2d)
        f3d_flat = feat_3d.reshape(M, -1)

        # ONE fused kernel launch for all three levels (head runs at low res;
        # the nearest upsample is commuted to after the pointwise head chain).
        packed = run_fused_head(cls2d, f3d_flat, wp)               # (L, M, NP)

        for level in range(L):
            up = 2 ** (2 - level)
            # slice the 13 live columns BEFORE replicating them 16x/4x/1x
            pk = packed[level][:, :npred].reshape(B, s3d, s3d, npred)
            pk = upsample_nearest(pk, up)                          # == F.interpolate
            fh = fw = s3d * up
            flat = pk.reshape(B, fh * fw, npred)
            conf_pred = flat[..., 0:1]
            cls_pred = flat[..., 1:1 + C]
            reg_pred = flat[..., 1 + C:1 + C + 4]
            anchors = generate_anchors((fh, fw), strides[level])
            box_pred = decode_boxes(anchors, reg_pred, strides[level])
            all_conf.append(conf_pred)
            all_cls.append(cls_pred)
            all_box.append(box_pred)
            all_anchors.append(anchors)
    else:
        # Non-default branch with three microscopic per-level heads: separate
        # grid=(1,) Pallas launches cost more than they save at these sizes
        # (per perf review), so it stays in fused XLA.
        reg_feats = [conv1x1_silu(avg_pool_nhwc(key_nhwc, s),
                                  params["bk2d_reg_w"][i], params["bk2d_reg_b"][i])
                     for i, s in enumerate(strides)]
        for level in range(L):
            fh = fw = spatial_sizes[level]
            f3d_up = upsample_nearest(feat_3d, 2 ** (2 - level))
            cls_f = conv1x1_silu(jnp.concatenate([cls_feats[level], f3d_up], -1),
                                 params["cls_enc_w"][level], params["cls_enc_b"][level])
            reg_f = conv1x1_silu(jnp.concatenate([reg_feats[level], f3d_up], -1),
                                 params["reg_enc_w"][level], params["reg_enc_b"][level])
            for (w, b) in params["cls_head"][level]:
                cls_f = conv1x1_silu(cls_f, w, b)
            for (w, b) in params["reg_head"][level]:
                reg_f = conv1x1_silu(reg_f, w, b)
            conf_pred = (jnp.einsum("bhwc,cd->bhwd", reg_f, params["conf_w"][level])
                         + params["conf_b"][level]).reshape(B, fh * fw, 1)
            cls_pred = (jnp.einsum("bhwc,cd->bhwd", cls_f, params["cls_w"][level])
                        + params["cls_b"][level]).reshape(B, fh * fw, C)
            reg_pred = (jnp.einsum("bhwc,cd->bhwd", reg_f, params["reg_w"][level])
                        + params["reg_b"][level]).reshape(B, fh * fw, 4)
            anchors = generate_anchors((fh, fw), strides[level])
            box_pred = decode_boxes(anchors, reg_pred, strides[level])
            all_conf.append(conf_pred)
            all_cls.append(cls_pred)
            all_box.append(box_pred)
            all_anchors.append(anchors)

    return {"pred_conf": all_conf, "pred_cls": all_cls, "pred_box": all_box,
            "anchors": all_anchors, "strides": jnp.asarray(strides)}


# ----------------------------------- main -------------------------------------

if __name__ == "__main__":
    cfg = ModelConfig()
    key = jax.random.PRNGKey(0)
    pkey, dkey = jax.random.split(key)
    params = init_params(cfg, pkey)

    B, T = 2, 4
    video = jax.random.normal(dkey, (B, 3, T, cfg.img_size, cfg.img_size), jnp.float32)

    forward = jax.jit(functools.partial(yowo_forward, cfg))
    outputs = forward(params, video)
    jax.block_until_ready(outputs)

    # shape sanity checks
    for level, s in enumerate(cfg.stride):
        m = (cfg.img_size // s) ** 2
        assert outputs["pred_conf"][level].shape == (B, m, 1)
        assert outputs["pred_cls"][level].shape == (B, m, cfg.num_classes)
        assert outputs["pred_box"][level].shape == (B, m, 4)
        assert outputs["anchors"][level].shape == (m, 2)

    print("KERNEL_OK")
</pallas_src>

<mosaic_0001>
module attributes {stable_mosaic.version = 11 : i64} {
  func.func @_fused_head_kernel(%arg0: memref<3x8x32xf32, #tpu.memory_space<vmem>>, %arg1: memref<8x32xf32, #tpu.memory_space<vmem>>, %arg2: memref<2x3x32x32xbf16, #tpu.memory_space<vmem>>, %arg3: memref<2x3x1x32xf32, #tpu.memory_space<vmem>>, %arg4: memref<32x192xbf16, #tpu.memory_space<vmem>>, %arg5: memref<3x2x64x64xbf16, #tpu.memory_space<vmem>>, %arg6: memref<3x2x1x64xf32, #tpu.memory_space<vmem>>, %arg7: memref<3x64x128xbf16, #tpu.memory_space<vmem>>, %arg8: memref<3x1x128xf32, #tpu.memory_space<vmem>>, %arg9: memref<3x8x128xf32, #tpu.memory_space<vmem>>) attributes {dimension_semantics = [], scalar_prefetch = 0 : i64, scratch_operands = 0 : i64, tpu.core_type = #tpu.core_type<tc>} {
    %c0 = arith.constant 0 : index
    %c0_0 = arith.constant 0 : index
    %0 = vector.load %arg1[%c0, %c0_0] : memref<8x32xf32, #tpu.memory_space<vmem>>, vector<8x32xf32>
    %c0_1 = arith.constant 0 : index
    %c0_2 = arith.constant 0 : index
    %1 = vector.load %arg4[%c0_1, %c0_2] : memref<32x192xbf16, #tpu.memory_space<vmem>>, vector<32x192xbf16>
    %2 = arith.truncf %0 : vector<8x32xf32> to vector<8x32xbf16>
    %cst = arith.constant dense<0.000000e+00> : vector<8x192xf32>
    %3 = tpu.matmul %2, %1, %cst {dimension_numbers = #tpu.dot_dimension_numbers<[1], [0], [0], [1], [0, 0, 1, 1], [], []>} : vector<8x32xbf16>, vector<32x192xbf16>, vector<8x192xf32> -> vector<8x192xf32>
    %c0_3 = arith.constant 0 : index
    %c0_4 = arith.constant 0 : index
    %c0_5 = arith.constant 0 : index
    %4 = vector.load %arg0[%c0_3, %c0_4, %c0_5] : memref<3x8x32xf32, #tpu.memory_space<vmem>>, vector<1x8x32xf32>
    %5 = vector.shape_cast %4 : vector<1x8x32xf32> to vector<8x32xf32>
    %6 = vector.extract_strided_slice %3 {offsets = [0, 0], sizes = [8, 32], strides = [1, 1]} : vector<8x192xf32> to vector<8x32xf32>
    %7 = vector.extract_strided_slice %3 {offsets = [0, 32], sizes = [8, 32], strides = [1, 1]} : vector<8x192xf32> to vector<8x32xf32>
    %c0_6 = arith.constant 0 : index
    %c0_7 = arith.constant 0 : index
    %c0_8 = arith.constant 0 : index
    %c0_9 = arith.constant 0 : index
    %8 = vector.load %arg2[%c0_6, %c0_7, %c0_8, %c0_9] : memref<2x3x32x32xbf16, #tpu.memory_space<vmem>>, vector<1x1x32x32xbf16>
    %9 = vector.shape_cast %8 : vector<1x1x32x32xbf16> to vector<32x32xbf16>
    %10 = arith.truncf %5 : vector<8x32xf32> to vector<8x32xbf16>
    %cst_10 = arith.constant dense<0.000000e+00> : vector<8x32xf32>
    %11 = tpu.matmul %10, %9, %cst_10 {dimension_numbers = #tpu.dot_dimension_numbers<[1], [0], [0], [1], [0, 0, 1, 1], [], []>} : vector<8x32xbf16>, vector<32x32xbf16>, vector<8x32xf32> -> vector<8x32xf32>
    %12 = arith.addf %11, %6 : vector<8x32xf32>
    %c0_11 = arith.constant 0 : index
    %c0_12 = arith.constant 0 : index
    %c0_13 = arith.constant 0 : index
    %c0_14 = arith.constant 0 : index
    %13 = vector.load %arg3[%c0_11, %c0_12, %c0_13, %c0_14] : memref<2x3x1x32xf32, #tpu.memory_space<vmem>>, vector<1x1x1x32xf32>
    %14 = vector.shape_cast %13 : vector<1x1x1x32xf32> to vector<1x32xf32>
    %15 = vector.broadcast %14 : vector<1x32xf32> to vector<8x32xf32>
    %16 = arith.addf %12, %15 : vector<8x32xf32>
    %17 = arith.negf %16 : vector<8x32xf32>
    %18 = math.exp %17 : vector<8x32xf32>
    %cst_15 = arith.constant 1.000000e+00 : f32
    %19 = vector.broadcast %cst_15 : f32 to vector<8x32xf32>
    %20 = arith.addf %19, %18 : vector<8x32xf32>
    %21 = arith.divf %19, %20 : vector<8x32xf32>
    %22 = arith.mulf %16, %21 : vector<8x32xf32>
    %c1 = arith.constant 1 : index
    %c0_16 = arith.constant 0 : index
    %c0_17 = arith.constant 0 : index
    %c0_18 = arith.constant 0 : index
    %23 = vector.load %arg2[%c1, %c0_16, %c0_17, %c0_18] : memref<2x3x32x32xbf16, #tpu.memory_space<vmem>>, vector<1x1x32x32xbf16>
    %24 = vector.shape_cast %23 : vector<1x1x32x32xbf16> to vector<32x32xbf16>
    %25 = arith.truncf %22 : vector<8x32xf32> to vector<8x32xbf16>
    %cst_19 = arith.constant dense<0.000000e+00> : vector<8x32xf32>
    %26 = tpu.matmul %25, %24, %cst_19 {dimension_numbers = #tpu.dot_dimension_numbers<[1], [0], [0], [1], [0, 0, 1, 1], [], []>} : vector<8x32xbf16>, vector<32x32xbf16>, vector<8x32xf32> -> vector<8x32xf32>
    %27 = arith.addf %26, %7 : vector<8x32xf32>
    %c1_20 = arith.constant 1 : index
    %c0_21 = arith.constant 0 : index
    %c0_22 = arith.constant 0 : index
    %c0_23 = arith.constant 0 : index
    %28 = vector.load %arg3[%c1_20, %c0_21, %c0_22, %c0_23] : memref<2x3x1x32xf32, #tpu.memory_space<vmem>>, vector<1x1x1x32xf32>
    %29 = vector.shape_cast %28 : vector<1x1x1x32xf32> to vector<1x32xf32>
    %30 = vector.broadcast %29 : vector<1x32xf32> to vector<8x32xf32>
    %31 = arith.addf %27, %30 : vector<8x32xf32>
    %32 = arith.negf %31 : vector<8x32xf32>
    %33 = math.exp %32 : vector<8x32xf32>
    %cst_24 = arith.constant 1.000000e+00 : f32
    %34 = vector.broadcast %cst_24 : f32 to vector<8x32xf32>
    %35 = arith.addf %34, %33 : vector<8x32xf32>
    %36 = arith.divf %34, %35 : vector<8x32xf32>
    %37 = arith.mulf %31, %36 : vector<8x32xf32>
    %38 = tpu.concatenate %22, %37 in 1 : vector<8x32xf32>, vector<8x32xf32> -> vector<8x64xf32>
    %c0_25 = arith.constant 0 : index
    %c0_26 = arith.constant 0 : index
    %c0_27 = arith.constant 0 : index
    %c0_28 = arith.constant 0 : index
    %39 = vector.load %arg5[%c0_25, %c0_26, %c0_27, %c0_28] : memref<3x2x64x64xbf16, #tpu.memory_space<vmem>>, vector<1x1x64x64xbf16>
    %40 = vector.shape_cast %39 : vector<1x1x64x64xbf16> to vector<64x64xbf16>
    %41 = arith.truncf %38 : vector<8x64xf32> to vector<8x64xbf16>
    %cst_29 = arith.constant dense<0.000000e+00> : vector<8x64xf32>
    %42 = tpu.matmul %41, %40, %cst_29 {dimension_numbers = #tpu.dot_dimension_numbers<[1], [0], [0], [1], [0, 0, 1, 1], [], []>} : vector<8x64xbf16>, vector<64x64xbf16>, vector<8x64xf32> -> vector<8x64xf32>
    %c0_30 = arith.constant 0 : index
    %c0_31 = arith.constant 0 : index
    %c0_32 = arith.constant 0 : index
    %c0_33 = arith.constant 0 : index
    %43 = vector.load %arg6[%c0_30, %c0_31, %c0_32, %c0_33] : memref<3x2x1x64xf32, #tpu.memory_space<vmem>>, vector<1x1x1x64xf32>
    %44 = vector.shape_cast %43 : vector<1x1x1x64xf32> to vector<1x64xf32>
    %45 = vector.broadcast %44 : vector<1x64xf32> to vector<8x64xf32>
    %46 = arith.addf %42, %45 : vector<8x64xf32>
    %47 = arith.negf %46 : vector<8x64xf32>
    %48 = math.exp %47 : vector<8x64xf32>
    %cst_34 = arith.constant 1.000000e+00 : f32
    %49 = vector.broadcast %cst_34 : f32 to vector<8x64xf32>
    %50 = arith.addf %49, %48 : vector<8x64xf32>
    %51 = arith.divf %49, %50 : vector<8x64xf32>
    %52 = arith.mulf %46, %51 : vector<8x64xf32>
    %c0_35 = arith.constant 0 : index
    %c1_36 = arith.constant 1 : index
    %c0_37 = arith.constant 0 : index
    %c0_38 = arith.constant 0 : index
    %53 = vector.load %arg5[%c0_35, %c1_36, %c0_37, %c0_38] : memref<3x2x64x64xbf16, #tpu.memory_space<vmem>>, vector<1x1x64x64xbf16>
    %54 = vector.shape_cast %53 : vector<1x1x64x64xbf16> to vector<64x64xbf16>
    %55 = arith.truncf %52 : vector<8x64xf32> to vector<8x64xbf16>
    %cst_39 = arith.constant dense<0.000000e+00> : vector<8x64xf32>
    %56 = tpu.matmul %55, %54, %cst_39 {dimension_numbers = #tpu.dot_dimension_numbers<[1], [0], [0], [1], [0, 0, 1, 1], [], []>} : vector<8x64xbf16>, vector<64x64xbf16>, vector<8x64xf32> -> vector<8x64xf32>
    %c0_40 = arith.constant 0 : index
    %c1_41 = arith.constant 1 : index
    %c0_42 = arith.constant 0 : index
    %c0_43 = arith.constant 0 : index
    %57 = vector.load %arg6[%c0_40, %c1_41, %c0_42, %c0_43] : memref<3x2x1x64xf32, #tpu.memory_space<vmem>>, vector<1x1x1x64xf32>
    %58 = vector.shape_cast %57 : vector<1x1x1x64xf32> to vector<1x64xf32>
    %59 = vector.broadcast %58 : vector<1x64xf32> to vector<8x64xf32>
    %60 = arith.addf %56, %59 : vector<8x64xf32>
    %61 = arith.negf %60 : vector<8x64xf32>
    %62 = math.exp %61 : vector<8x64xf32>
    %cst_44 = arith.constant 1.000000e+00 : f32
    %63 = vector.broadcast %cst_44 : f32 to vector<8x64xf32>
    %64 = arith.addf %63, %62 : vector<8x64xf32>
    %65 = arith.divf %63, %64 : vector<8x64xf32>
    %66 = arith.mulf %60, %65 : vector<8x64xf32>
    %c0_45 = arith.constant 0 : index
    %c0_46 = arith.constant 0 : index
    %c0_47 = arith.constant 0 : index
    %67 = vector.load %arg7[%c0_45, %c0_46, %c0_47] : memref<3x64x128xbf16, #tpu.memory_space<vmem>>, vector<1x64x128xbf16>
    %68 = vector.shape_cast %67 : vector<1x64x128xbf16> to vector<64x128xbf16>
    %69 = arith.truncf %66 : vector<8x64xf32> to vector<8x64xbf16>
    %cst_48 = arith.constant dense<0.000000e+00> : vector<8x128xf32>
    %70 = tpu.matmul %69, %68, %cst_48 {dimension_numbers = #tpu.dot_dimension_numbers<[1], [0], [0], [1], [0, 0, 1, 1], [], []>} : vector<8x64xbf16>, vector<64x128xbf16>, vector<8x128xf32> -> vector<8x128xf32>
    %c0_49 = arith.constant 0 : index
    %c0_50 = arith.constant 0 : index
    %c0_51 = arith.constant 0 : index
    %71 = vector.load %arg8[%c0_49, %c0_50, %c0_51] : memref<3x1x128xf32, #tpu.memory_space<vmem>>, vector<1x1x128xf32>
    %72 = vector.shape_cast %71 : vector<1x1x128xf32> to vector<1x128xf32>
    %73 = vector.broadcast %72 : vector<1x128xf32> to vector<8x128xf32>
    %74 = arith.addf %70, %73 : vector<8x128xf32>
    %c0_52 = arith.constant 0 : index
    %c0_53 = arith.constant 0 : index
    %c0_54 = arith.constant 0 : index
    %75 = vector.load %arg9[%c0_52, %c0_53, %c0_54] : memref<3x8x128xf32, #tpu.memory_space<vmem>>, vector<1x8x128xf32>
    %76 = vector.shape_cast %75 : vector<1x8x128xf32> to vector<8x128xf32>
    %77 = vector.shape_cast %74 : vector<8x128xf32> to vector<1x8x128xf32>
    tpu.vector_store %arg9[%c0_52, %c0_53, %c0_54], %77 {strides = array<i32>} : memref<3x8x128xf32, #tpu.memory_space<vmem>>, vector<1x8x128xf32>,
    %c1_55 = arith.constant 1 : index
    %c0_56 = arith.constant 0 : index
    %c0_57 = arith.constant 0 : index
    %78 = vector.load %arg0[%c1_55, %c0_56, %c0_57] : memref<3x8x32xf32, #tpu.memory_space<vmem>>, vector<1x8x32xf32>
    %79 = vector.shape_cast %78 : vector<1x8x32xf32> to vector<8x32xf32>
    %80 = vector.extract_strided_slice %3 {offsets = [0, 64], sizes = [8, 32], strides = [1, 1]} : vector<8x192xf32> to vector<8x32xf32>
    %81 = vector.extract_strided_slice %3 {offsets = [0, 96], sizes = [8, 32], strides = [1, 1]} : vector<8x192xf32> to vector<8x32xf32>
    %c0_58 = arith.constant 0 : index
    %c1_59 = arith.constant 1 : index
    %c0_60 = arith.constant 0 : index
    %c0_61 = arith.constant 0 : index
    %82 = vector.load %arg2[%c0_58, %c1_59, %c0_60, %c0_61] : memref<2x3x32x32xbf16, #tpu.memory_space<vmem>>, vector<1x1x32x32xbf16>
    %83 = vector.shape_cast %82 : vector<1x1x32x32xbf16> to vector<32x32xbf16>
    %84 = arith.truncf %79 : vector<8x32xf32> to vector<8x32xbf16>
    %cst_62 = arith.constant dense<0.000000e+00> : vector<8x32xf32>
    %85 = tpu.matmul %84, %83, %cst_62 {dimension_numbers = #tpu.dot_dimension_numbers<[1], [0], [0], [1], [0, 0, 1, 1], [], []>} : vector<8x32xbf16>, vector<32x32xbf16>, vector<8x32xf32> -> vector<8x32xf32>
    %86 = arith.addf %85, %80 : vector<8x32xf32>
    %c0_63 = arith.constant 0 : index
    %c1_64 = arith.constant 1 : index
    %c0_65 = arith.constant 0 : index
    %c0_66 = arith.constant 0 : index
    %87 = vector.load %arg3[%c0_63, %c1_64, %c0_65, %c0_66] : memref<2x3x1x32xf32, #tpu.memory_space<vmem>>, vector<1x1x1x32xf32>
    %88 = vector.shape_cast %87 : vector<1x1x1x32xf32> to vector<1x32xf32>
    %89 = vector.broadcast %88 : vector<1x32xf32> to vector<8x32xf32>
    %90 = arith.addf %86, %89 : vector<8x32xf32>
    %91 = arith.negf %90 : vector<8x32xf32>
    %92 = math.exp %91 : vector<8x32xf32>
    %cst_67 = arith.constant 1.000000e+00 : f32
    %93 = vector.broadcast %cst_67 : f32 to vector<8x32xf32>
    %94 = arith.addf %93, %92 : vector<8x32xf32>
    %95 = arith.divf %93, %94 : vector<8x32xf32>
    %96 = arith.mulf %90, %95 : vector<8x32xf32>
    %c1_68 = arith.constant 1 : index
    %c1_69 = arith.constant 1 : index
    %c0_70 = arith.constant 0 : index
    %c0_71 = arith.constant 0 : index
    %97 = vector.load %arg2[%c1_68, %c1_69, %c0_70, %c0_71] : memref<2x3x32x32xbf16, #tpu.memory_space<vmem>>, vector<1x1x32x32xbf16>
    %98 = vector.shape_cast %97 : vector<1x1x32x32xbf16> to vector<32x32xbf16>
    %99 = arith.truncf %96 : vector<8x32xf32> to vector<8x32xbf16>
    %cst_72 = arith.constant dense<0.000000e+00> : vector<8x32xf32>
    %100 = tpu.matmul %99, %98, %cst_72 {dimension_numbers = #tpu.dot_dimension_numbers<[1], [0], [0], [1], [0, 0, 1, 1], [], []>} : vector<8x32xbf16>, vector<32x32xbf16>, vector<8x32xf32> -> vector<8x32xf32>
    %101 = arith.addf %100, %81 : vector<8x32xf32>
    %c1_73 = arith.constant 1 : index
    %c1_74 = arith.constant 1 : index
    %c0_75 = arith.constant 0 : index
    %c0_76 = arith.constant 0 : index
    %102 = vector.load %arg3[%c1_73, %c1_74, %c0_75, %c0_76] : memref<2x3x1x32xf32, #tpu.memory_space<vmem>>, vector<1x1x1x32xf32>
    %103 = vector.shape_cast %102 : vector<1x1x1x32xf32> to vector<1x32xf32>
    %104 = vector.broadcast %103 : vector<1x32xf32> to vector<8x32xf32>
    %105 = arith.addf %101, %104 : vector<8x32xf32>
    %106 = arith.negf %105 : vector<8x32xf32>
    %107 = math.exp %106 : vector<8x32xf32>
    %cst_77 = arith.constant 1.000000e+00 : f32
    %108 = vector.broadcast %cst_77 : f32 to vector<8x32xf32>
    %109 = arith.addf %108, %107 : vector<8x32xf32>
    %110 = arith.divf %108, %109 : vector<8x32xf32>
    %111 = arith.mulf %105, %110 : vector<8x32xf32>
    %112 = tpu.concatenate %96, %111 in 1 : vector<8x32xf32>, vector<8x32xf32> -> vector<8x64xf32>
    %c1_78 = arith.constant 1 : index
    %c0_79 = arith.constant 0 : index
    %c0_80 = arith.constant 0 : index
    %c0_81 = arith.constant 0 : index
    %113 = vector.load %arg5[%c1_78, %c0_79, %c0_80, %c0_81] : memref<3x2x64x64xbf16, #tpu.memory_space<vmem>>, vector<1x1x64x64xbf16>
    %114 = vector.shape_cast %113 : vector<1x1x64x64xbf16> to vector<64x64xbf16>
    %115 = arith.truncf %112 : vector<8x64xf32> to vector<8x64xbf16>
    %cst_82 = arith.constant dense<0.000000e+00> : vector<8x64xf32>
    %116 = tpu.matmul %115, %114, %cst_82 {dimension_numbers = #tpu.dot_dimension_numbers<[1], [0], [0], [1], [0, 0, 1, 1], [], []>} : vector<8x64xbf16>, vector<64x64xbf16>, vector<8x64xf32> -> vector<8x64xf32>
    %c1_83 = arith.constant 1 : index
    %c0_84 = arith.constant 0 : index
    %c0_85 = arith.constant 0 : index
    %c0_86 = arith.constant 0 : index
    %117 = vector.load %arg6[%c1_83, %c0_84, %c0_85, %c0_86] : memref<3x2x1x64xf32, #tpu.memory_space<vmem>>, vector<1x1x1x64xf32>
    %118 = vector.shape_cast %117 : vector<1x1x1x64xf32> to vector<1x64xf32>
    %119 = vector.broadcast %118 : vector<1x64xf32> to vector<8x64xf32>
    %120 = arith.addf %116, %119 : vector<8x64xf32>
    %121 = arith.negf %120 : vector<8x64xf32>
    %122 = math.exp %121 : vector<8x64xf32>
    %cst_87 = arith.constant 1.000000e+00 : f32
    %123 = vector.broadcast %cst_87 : f32 to vector<8x64xf32>
    %124 = arith.addf %123, %122 : vector<8x64xf32>
    %125 = arith.divf %123, %124 : vector<8x64xf32>
    %126 = arith.mulf %120, %125 : vector<8x64xf32>
    %c1_88 = arith.constant 1 : index
    %c1_89 = arith.constant 1 : index
    %c0_90 = arith.constant 0 : index
    %c0_91 = arith.constant 0 : index
    %127 = vector.load %arg5[%c1_88, %c1_89, %c0_90, %c0_91] : memref<3x2x64x64xbf16, #tpu.memory_space<vmem>>, vector<1x1x64x64xbf16>
    %128 = vector.shape_cast %127 : vector<1x1x64x64xbf16> to vector<64x64xbf16>
    %129 = arith.truncf %126 : vector<8x64xf32> to vector<8x64xbf16>
    %cst_92 = arith.constant dense<0.000000e+00> : vector<8x64xf32>
    %130 = tpu.matmul %129, %128, %cst_92 {dimension_numbers = #tpu.dot_dimension_numbers<[1], [0], [0], [1], [0, 0, 1, 1], [], []>} : vector<8x64xbf16>, vector<64x64xbf16>, vector<8x64xf32> -> vector<8x64xf32>
    %c1_93 = arith.constant 1 : index
    %c1_94 = arith.constant 1 : index
    %c0_95 = arith.constant 0 : index
    %c0_96 = arith.constant 0 : index
    %131 = vector.load %arg6[%c1_93, %c1_94, %c0_95, %c0_96] : memref<3x2x1x64xf32, #tpu.memory_space<vmem>>, vector<1x1x1x64xf32>
    %132 = vector.shape_cast %131 : vector<1x1x1x64xf32> to vector<1x64xf32>
    %133 = vector.broadcast %132 : vector<1x64xf32> to vector<8x64xf32>
    %134 = arith.addf %130, %133 : vector<8x64xf32>
    %135 = arith.negf %134 : vector<8x64xf32>
    %136 = math.exp %135 : vector<8x64xf32>
    %cst_97 = arith.constant 1.000000e+00 : f32
    %137 = vector.broadcast %cst_97 : f32 to vector<8x64xf32>
    %138 = arith.addf %137, %136 : vector<8x64xf32>
    %139 = arith.divf %137, %138 : vector<8x64xf32>
    %140 = arith.mulf %134, %139 : vector<8x64xf32>
    %c1_98 = arith.constant 1 : index
    %c0_99 = arith.constant 0 : index
    %c0_100 = arith.constant 0 : index
    %141 = vector.load %arg7[%c1_98, %c0_99, %c0_100] : memref<3x64x128xbf16, #tpu.memory_space<vmem>>, vector<1x64x128xbf16>
    %142 = vector.shape_cast %141 : vector<1x64x128xbf16> to vector<64x128xbf16>
    %143 = arith.truncf %140 : vector<8x64xf32> to vector<8x64xbf16>
    %cst_101 = arith.constant dense<0.000000e+00> : vector<8x128xf32>
    %144 = tpu.matmul %143, %142, %cst_101 {dimension_numbers = #tpu.dot_dimension_numbers<[1], [0], [0], [1], [0, 0, 1, 1], [], []>} : vector<8x64xbf16>, vector<64x128xbf16>, vector<8x128xf32> -> vector<8x128xf32>
    %c1_102 = arith.constant 1 : index
    %c0_103 = arith.constant 0 : index
    %c0_104 = arith.constant 0 : index
    %145 = vector.load %arg8[%c1_102, %c0_103, %c0_104] : memref<3x1x128xf32, #tpu.memory_space<vmem>>, vector<1x1x128xf32>
    %146 = vector.shape_cast %145 : vector<1x1x128xf32> to vector<1x128xf32>
    %147 = vector.broadcast %146 : vector<1x128xf32> to vector<8x128xf32>
    %148 = arith.addf %144, %147 : vector<8x128xf32>
    %c1_105 = arith.constant 1 : index
    %c0_106 = arith.constant 0 : index
    %c0_107 = arith.constant 0 : index
    %149 = vector.load %arg9[%c1_105, %c0_106, %c0_107] : memref<3x8x128xf32, #tpu.memory_space<vmem>>, vector<1x8x128xf32>
    %150 = vector.shape_cast %149 : vector<1x8x128xf32> to vector<8x128xf32>
    %151 = vector.shape_cast %148 : vector<8x128xf32> to vector<1x8x128xf32>
    tpu.vector_store %arg9[%c1_105, %c0_106, %c0_107], %151 {strides = array<i32>} : memref<3x8x128xf32, #tpu.memory_space<vmem>>, vector<1x8x128xf32>,
    %c2 = arith.constant 2 : index
    %c0_108 = arith.constant 0 : index
    %c0_109 = arith.constant 0 : index
    %152 = vector.load %arg0[%c2, %c0_108, %c0_109] : memref<3x8x32xf32, #tpu.memory_space<vmem>>, vector<1x8x32xf32>
    %153 = vector.shape_cast %152 : vector<1x8x32xf32> to vector<8x32xf32>
    %154 = vector.extract_strided_slice %3 {offsets = [0, 128], sizes = [8, 32], strides = [1, 1]} : vector<8x192xf32> to vector<8x32xf32>
    %155 = vector.extract_strided_slice %3 {offsets = [0, 160], sizes = [8, 32], strides = [1, 1]} : vector<8x192xf32> to vector<8x32xf32>
    %c0_110 = arith.constant 0 : index
    %c2_111 = arith.constant 2 : index
    %c0_112 = arith.constant 0 : index
    %c0_113 = arith.constant 0 : index
    %156 = vector.load %arg2[%c0_110, %c2_111, %c0_112, %c0_113] : memref<2x3x32x32xbf16, #tpu.memory_space<vmem>>, vector<1x1x32x32xbf16>
    %157 = vector.shape_cast %156 : vector<1x1x32x32xbf16> to vector<32x32xbf16>
    %158 = arith.truncf %153 : vector<8x32xf32> to vector<8x32xbf16>
    %cst_114 = arith.constant dense<0.000000e+00> : vector<8x32xf32>
    %159 = tpu.matmul %158, %157, %cst_114 {dimension_numbers = #tpu.dot_dimension_numbers<[1], [0], [0], [1], [0, 0, 1, 1], [], []>} : vector<8x32xbf16>, vector<32x32xbf16>, vector<8x32xf32> -> vector<8x32xf32>
    %160 = arith.addf %159, %154 : vector<8x32xf32>
    %c0_115 = arith.constant 0 : index
    %c2_116 = arith.constant 2 : index
    %c0_117 = arith.constant 0 : index
    %c0_118 = arith.constant 0 : index
    %161 = vector.load %arg3[%c0_115, %c2_116, %c0_117, %c0_118] : memref<2x3x1x32xf32, #tpu.memory_space<vmem>>, vector<1x1x1x32xf32>
    %162 = vector.shape_cast %161 : vector<1x1x1x32xf32> to vector<1x32xf32>
    %163 = vector.broadcast %162 : vector<1x32xf32> to vector<8x32xf32>
    %164 = arith.addf %160, %163 : vector<8x32xf32>
    %165 = arith.negf %164 : vector<8x32xf32>
    %166 = math.exp %165 : vector<8x32xf32>
    %cst_119 = arith.constant 1.000000e+00 : f32
    %167 = vector.broadcast %cst_119 : f32 to vector<8x32xf32>
    %168 = arith.addf %167, %166 : vector<8x32xf32>
    %169 = arith.divf %167, %168 : vector<8x32xf32>
    %170 = arith.mulf %164, %169 : vector<8x32xf32>
    %c1_120 = arith.constant 1 : index
    %c2_121 = arith.constant 2 : index
    %c0_122 = arith.constant 0 : index
    %c0_123 = arith.constant 0 : index
    %171 = vector.load %arg2[%c1_120, %c2_121, %c0_122, %c0_123] : memref<2x3x32x32xbf16, #tpu.memory_space<vmem>>, vector<1x1x32x32xbf16>
    %172 = vector.shape_cast %171 : vector<1x1x32x32xbf16> to vector<32x32xbf16>
    %173 = arith.truncf %170 : vector<8x32xf32> to vector<8x32xbf16>
    %cst_124 = arith.constant dense<0.000000e+00> : vector<8x32xf32>
    %174 = tpu.matmul %173, %172, %cst_124 {dimension_numbers = #tpu.dot_dimension_numbers<[1], [0], [0], [1], [0, 0, 1, 1], [], []>} : vector<8x32xbf16>, vector<32x32xbf16>, vector<8x32xf32> -> vector<8x32xf32>
    %175 = arith.addf %174, %155 : vector<8x32xf32>
    %c1_125 = arith.constant 1 : index
    %c2_126 = arith.constant 2 : index
    %c0_127 = arith.constant 0 : index
    %c0_128 = arith.constant 0 : index
    %176 = vector.load %arg3[%c1_125, %c2_126, %c0_127, %c0_128] : memref<2x3x1x32xf32, #tpu.memory_space<vmem>>, vector<1x1x1x32xf32>
    %177 = vector.shape_cast %176 : vector<1x1x1x32xf32> to vector<1x32xf32>
    %178 = vector.broadcast %177 : vector<1x32xf32> to vector<8x32xf32>
    %179 = arith.addf %175, %178 : vector<8x32xf32>
    %180 = arith.negf %179 : vector<8x32xf32>
    %181 = math.exp %180 : vector<8x32xf32>
    %cst_129 = arith.constant 1.000000e+00 : f32
    %182 = vector.broadcast %cst_129 : f32 to vector<8x32xf32>
    %183 = arith.addf %182, %181 : vector<8x32xf32>
    %184 = arith.divf %182, %183 : vector<8x32xf32>
    %185 = arith.mulf %179, %184 : vector<8x32xf32>
    %186 = tpu.concatenate %170, %185 in 1 : vector<8x32xf32>, vector<8x32xf32> -> vector<8x64xf32>
    %c2_130 = arith.constant 2 : index
    %c0_131 = arith.constant 0 : index
    %c0_132 = arith.constant 0 : index
    %c0_133 = arith.constant 0 : index
    %187 = vector.load %arg5[%c2_130, %c0_131, %c0_132, %c0_133] : memref<3x2x64x64xbf16, #tpu.memory_space<vmem>>, vector<1x1x64x64xbf16>
    %188 = vector.shape_cast %187 : vector<1x1x64x64xbf16> to vector<64x64xbf16>
    %189 = arith.truncf %186 : vector<8x64xf32> to vector<8x64xbf16>
    %cst_134 = arith.constant dense<0.000000e+00> : vector<8x64xf32>
    %190 = tpu.matmul %189, %188, %cst_134 {dimension_numbers = #tpu.dot_dimension_numbers<[1], [0], [0], [1], [0, 0, 1, 1], [], []>} : vector<8x64xbf16>, vector<64x64xbf16>, vector<8x64xf32> -> vector<8x64xf32>
    %c2_135 = arith.constant 2 : index
    %c0_136 = arith.constant 0 : index
    %c0_137 = arith.constant 0 : index
    %c0_138 = arith.constant 0 : index
    %191 = vector.load %arg6[%c2_135, %c0_136, %c0_137, %c0_138] : memref<3x2x1x64xf32, #tpu.memory_space<vmem>>, vector<1x1x1x64xf32>
    %192 = vector.shape_cast %191 : vector<1x1x1x64xf32> to vector<1x64xf32>
    %193 = vector.broadcast %192 : vector<1x64xf32> to vector<8x64xf32>
    %194 = arith.addf %190, %193 : vector<8x64xf32>
    %195 = arith.negf %194 : vector<8x64xf32>
    %196 = math.exp %195 : vector<8x64xf32>
    %cst_139 = arith.constant 1.000000e+00 : f32
    %197 = vector.broadcast %cst_139 : f32 to vector<8x64xf32>
    %198 = arith.addf %197, %196 : vector<8x64xf32>
    %199 = arith.divf %197, %198 : vector<8x64xf32>
    %200 = arith.mulf %194, %199 : vector<8x64xf32>
    %c2_140 = arith.constant 2 : index
    %c1_141 = arith.constant 1 : index
    %c0_142 = arith.constant 0 : index
    %c0_143 = arith.constant 0 : index
    %201 = vector.load %arg5[%c2_140, %c1_141, %c0_142, %c0_143] : memref<3x2x64x64xbf16, #tpu.memory_space<vmem>>, vector<1x1x64x64xbf16>
    %202 = vector.shape_cast %201 : vector<1x1x64x64xbf16> to vector<64x64xbf16>
    %203 = arith.truncf %200 : vector<8x64xf32> to vector<8x64xbf16>
    %cst_144 = arith.constant dense<0.000000e+00> : vector<8x64xf32>
    %204 = tpu.matmul %203, %202, %cst_144 {dimension_numbers = #tpu.dot_dimension_numbers<[1], [0], [0], [1], [0, 0, 1, 1], [], []>} : vector<8x64xbf16>, vector<64x64xbf16>, vector<8x64xf32> -> vector<8x64xf32>
    %c2_145 = arith.constant 2 : index
    %c1_146 = arith.constant 1 : index
    %c0_147 = arith.constant 0 : index
    %c0_148 = arith.constant 0 : index
    %205 = vector.load %arg6[%c2_145, %c1_146, %c0_147, %c0_148] : memref<3x2x1x64xf32, #tpu.memory_space<vmem>>, vector<1x1x1x64xf32>
    %206 = vector.shape_cast %205 : vector<1x1x1x64xf32> to vector<1x64xf32>
    %207 = vector.broadcast %206 : vector<1x64xf32> to vector<8x64xf32>
    %208 = arith.addf %204, %207 : vector<8x64xf32>
    %209 = arith.negf %208 : vector<8x64xf32>
    %210 = math.exp %209 : vector<8x64xf32>
    %cst_149 = arith.constant 1.000000e+00 : f32
    %211 = vector.broadcast %cst_149 : f32 to vector<8x64xf32>
    %212 = arith.addf %211, %210 : vector<8x64xf32>
    %213 = arith.divf %211, %212 : vector<8x64xf32>
    %214 = arith.mulf %208, %213 : vector<8x64xf32>
    %c2_150 = arith.constant 2 : index
    %c0_151 = arith.constant 0 : index
    %c0_152 = arith.constant 0 : index
    %215 = vector.load %arg7[%c2_150, %c0_151, %c0_152] : memref<3x64x128xbf16, #tpu.memory_space<vmem>>, vector<1x64x128xbf16>
    %216 = vector.shape_cast %215 : vector<1x64x128xbf16> to vector<64x128xbf16>
    %217 = arith.truncf %214 : vector<8x64xf32> to vector<8x64xbf16>
    %cst_153 = arith.constant dense<0.000000e+00> : vector<8x128xf32>
    %218 = tpu.matmul %217, %216, %cst_153 {dimension_numbers = #tpu.dot_dimension_numbers<[1], [0], [0], [1], [0, 0, 1, 1], [], []>} : vector<8x64xbf16>, vector<64x128xbf16>, vector<8x128xf32> -> vector<8x128xf32>
    %c2_154 = arith.constant 2 : index
    %c0_155 = arith.constant 0 : index
    %c0_156 = arith.constant 0 : index
    %219 = vector.load %arg8[%c2_154, %c0_155, %c0_156] : memref<3x1x128xf32, #tpu.memory_space<vmem>>, vector<1x1x128xf32>
    %220 = vector.shape_cast %219 : vector<1x1x128xf32> to vector<1x128xf32>
    %221 = vector.broadcast %220 : vector<1x128xf32> to vector<8x128xf32>
    %222 = arith.addf %218, %221 : vector<8x128xf32>
    %c2_157 = arith.constant 2 : index
    %c0_158 = arith.constant 0 : index
    %c0_159 = arith.constant 0 : index
    %223 = vector.load %arg9[%c2_157, %c0_158, %c0_159] : memref<3x8x128xf32, #tpu.memory_space<vmem>>, vector<1x8x128xf32>
    %224 = vector.shape_cast %223 : vector<1x8x128xf32> to vector<8x128xf32>
    %225 = vector.shape_cast %222 : vector<8x128xf32> to vector<1x8x128xf32>
    tpu.vector_store %arg9[%c2_157, %c0_158, %c0_159], %225 {strides = array<i32>} : memref<3x8x128xf32, #tpu.memory_space<vmem>>, vector<1x8x128xf32>,
    return
  }
}

</mosaic_0001>

<llo_original>
// kernel: yowo_forward.1
$region0: #{yowo_forward.1}
  #allocation0 [shape = 'u32[]', space=smem, size = 0x4, offset = 0x4, fixed_abs, tag = 'smem constant byte address 0x4 - core index']
  #allocation1 [shape = 'u32[72,128]{1,0:T(1,128)}', space=vmem, size = 0x9000, scoped, tag = 'internal scratch']
  %s0 = inlined_call_operand.vmem [shape: f32[3,8,32], index: 0, kind: input, shape index: {}]
  %s1 = inlined_call_operand.vmem [shape: f32[8,32], index: 1, kind: input, shape index: {}]
  %s2 = inlined_call_operand.vmem [shape: bf16[2,3,32,32], index: 2, kind: input, shape index: {}]
  %s3 = inlined_call_operand.vmem [shape: f32[2,3,1,32], index: 3, kind: input, shape index: {}]
  %s4 = inlined_call_operand.vmem [shape: bf16[32,192], index: 4, kind: input, shape index: {}]
  %s5 = inlined_call_operand.vmem [shape: bf16[3,2,64,64], index: 5, kind: input, shape index: {}]
  %s6 = inlined_call_operand.vmem [shape: f32[3,2,1,64], index: 6, kind: input, shape index: {}]
  %s7 = inlined_call_operand.vmem [shape: bf16[3,64,128], index: 7, kind: input, shape index: {}]
  %s8 = inlined_call_operand.vmem [shape: f32[3,1,128], index: 8, kind: input, shape index: {}]
  %s9 = inlined_call_operand.vmem [shape: f32[3,8,128], index: 9, kind: output, shape index: {}]
  %s10 = sld [smem:[#allocation0]]
  $region46: #{yowo_forward.1} parent=0
    _
  %s12 = ssub.s32 1, %s10
  %s13 = scalar_select 0, %s12, %s10
  // Predicated region
  $region2: #{yowo_forward.1} parent=0 // pred_check
    _
  $region3: #{yowo_forward.1} parent=0 // pred_check_branch
    %15 = sbr.rel (0) target = $region5
  $region4: #{yowo_forward.1} parent=0 // pred_region
    _
  $region5: #{yowo_forward.1} parent=0 // pred_fallthru
    _
  // Predicated region
  $region6: #{yowo_forward.1} parent=0 // pred_check
    _
  $region7: #{yowo_forward.1} parent=0 // pred_check_branch
    %17 = sbr.rel (0) target = $region9
  $region8: #{yowo_forward.1} parent=0 // pred_region
    _
  $region9: #{yowo_forward.1} parent=0 // pred_fallthru
    _
  // Predicated region
  $region10: #{yowo_forward.1} parent=0 // pred_check
    _
  $region11: #{yowo_forward.1} parent=0 // pred_check_branch
    %19 = sbr.rel (0) target = $region13
  $region12: #{yowo_forward.1} parent=0 // pred_region
    _
  $region13: #{yowo_forward.1} parent=0 // pred_fallthru
    _
  // Predicated region
  $region14: #{yowo_forward.1} parent=0 // pred_check
    _
  $region15: #{yowo_forward.1} parent=0 // pred_check_branch
    %21 = sbr.rel (0) target = $region17
  $region16: #{yowo_forward.1} parent=0 // pred_region
    _
  $region17: #{yowo_forward.1} parent=0 // pred_fallthru
    _
  // Predicated region
  $region18: #{yowo_forward.1} parent=0 // pred_check
    _
  $region19: #{yowo_forward.1} parent=0 // pred_check_branch
    %23 = sbr.rel (0) target = $region21
  $region20: #{yowo_forward.1} parent=0 // pred_region
    _
  $region21: #{yowo_forward.1} parent=0 // pred_fallthru
    _
  // Predicated region
  $region22: #{yowo_forward.1} parent=0 // pred_check
    _
  $region23: #{yowo_forward.1} parent=0 // pred_check_branch
    %25 = sbr.rel (0) target = $region25
  $region24: #{yowo_forward.1} parent=0 // pred_region
    _
  $region25: #{yowo_forward.1} parent=0 // pred_fallthru
    _
  // Predicated region
  $region26: #{yowo_forward.1} parent=0 // pred_check
    _
  $region27: #{yowo_forward.1} parent=0 // pred_check_branch
    %27 = sbr.rel (0) target = $region29
  $region28: #{yowo_forward.1} parent=0 // pred_region
    _
  $region29: #{yowo_forward.1} parent=0 // pred_fallthru
    _
  // Predicated region
  $region30: #{yowo_forward.1} parent=0 // pred_check
    _
  $region31: #{yowo_forward.1} parent=0 // pred_check_branch
    %29 = sbr.rel (0) target = $region33
  $region32: #{yowo_forward.1} parent=0 // pred_region
    _
  $region33: #{yowo_forward.1} parent=0 // pred_fallthru
    _
  // Predicated region
  $region34: #{yowo_forward.1} parent=0 // pred_check
    _
  $region35: #{yowo_forward.1} parent=0 // pred_check_branch
    %31 = sbr.rel (0) target = $region37
  $region36: #{yowo_forward.1} parent=0 // pred_region
    _
  $region37: #{yowo_forward.1} parent=0 // pred_fallthru
    _
  %v33 = vld [vmem:[%s1] sm:$0xff]
  %v34 = vld [vmem:[%s4] sm:$0xff]
  %v35 = vld [vmem:[%s4 + $0x8] sm:$0xff]
  %v36 = vld [vmem:[%s4 + $0x10] sm:$0xff]
  %v37 = vld [vmem:[%s4 + $0x18] sm:$0xff]
  %v38 = vpack.c.bf16 %v33, %v33
  %v43 = vunpack.c.l.b16 %v34
  %v44 = vunpack.c.h.b16 %v34
  %v45 = vunpack.c.l.b16 %v35
  %v46 = vunpack.c.h.b16 %v35
  %v47 = vunpack.c.l.b16 %v36
  %v48 = vunpack.c.h.b16 %v36
  %v49 = vunpack.c.l.b16 %v37
  %v50 = vunpack.c.h.b16 %v37
  %v51 = vpack.c.b16 %v45, %v43
  %v52 = vpack.c.b16 %v46, %v44
  %v53 = vpack.c.b16 %v49, %v47
  %v54 = vpack.c.b16 %v50, %v48
  %vm59 = vcmask 261120
  %v61 = vsel %vm59, %v38, 0
  %63 = vmatpush.bf16.msra.mxu0 0
  %64 = vmatpush.bf16.msra.mxu0 0
  %65 = vmatpush.bf16.msra.mxu0 0
  %66 = vmatpush.bf16.msra.mxu0 0
  %67 = vmatpush.bf16.msra.mxu0 0
  %68 = vmatpush.bf16.msra.mxu0 0
  %69 = vmatpush.bf16.msra.mxu0 %v53
  %70 = vmatpush.bf16.msra.mxu0 %v51
  %71 = vmatmul.bf16.gmra.mxu0 %v61
  %v72 = vpop.f32.mrf.mxu0
  %v73 = vadd.f32 0.0, %v72
  %v74 = vpop.f32.mrf.mxu0
  %75 = vdwg.mxu0
  %76 = vmatpush.bf16.msra.mxu0 0
  %77 = vmatpush.bf16.msra.mxu0 0
  %78 = vmatpush.bf16.msra.mxu0 0
  %79 = vmatpush.bf16.msra.mxu0 0
  %80 = vmatpush.bf16.msra.mxu0 0
  %81 = vmatpush.bf16.msra.mxu0 0
  %82 = vmatpush.bf16.msra.mxu0 %v54
  %83 = vmatpush.bf16.msra.mxu0 %v52
  %84 = vmatmul.bf16.gmra.mxu0 %v61
  %v85 = vpop.f32.mrf.mxu0
  %v86 = vadd.f32 0.0, %v85
  %v87 = vpop.f32.mrf.mxu0
  %88 = vdwg.mxu0
  %v89 = vld [vmem:[%s0] sm:$0xff]
  %v90 = vld [vmem:[%s2] sm:$0xf]
  %v91 = vld [vmem:[%s2 + $0x4] sm:$0xf]
  %v92 = vld [vmem:[%s2 + $0x8] sm:$0xf]
  %v93 = vld [vmem:[%s2 + $0xc] sm:$0xf]
  %v94 = vpack.c.bf16 %v89, %v89
  %v99 = vunpack.c.l.b16 %v90
  %v100 = vunpack.c.l.b16 %v91
  %v101 = vunpack.c.l.b16 %v92
  %v102 = vunpack.c.l.b16 %v93
  %v103 = vpack.c.b16 %v100, %v99
  %v104 = vpack.c.b16 %v102, %v101
  %v108 = vsel %vm59, %v94, 0
  %110 = vmatpush.bf16.msra.mxu0 0
  %111 = vmatpush.bf16.msra.mxu0 0
  %112 = vmatpush.bf16.msra.mxu0 0
  %113 = vmatpush.bf16.msra.mxu0 0
  %114 = vmatpush.bf16.msra.mxu0 0
  %115 = vmatpush.bf16.msra.mxu0 0
  %116 = vmatpush.bf16.msra.mxu0 %v104
  %117 = vmatpush.bf16.msra.mxu0 %v103
  %118 = vmatmul.bf16.gmra.mxu0 %v108
  %v119 = vpop.f32.mrf.mxu0
  %v120 = vadd.f32 %v73, %v119
  %v121 = vpop.f32.mrf.mxu0
  %122 = vdwg.mxu0
  %v123 = vld [vmem:[%s3] sm:$0x1]
  %v125 = vperm.slane %v123, 0
  %v127 = vadd.f32 %v120, %v125
  %v128 = vxor.u32 %v127, 2147483648
  %v129 = vmul.f32 %v128, 1.442695
  %v130 = vpow.pop %v129
  %v131 = vadd.f32 %v130, 1.0
  %v132 = vrcp.pop %v131
  %v133 = vmul.f32 %v131, %v132
  %v134 = vsub.f32 1.0, %v133
  %v135 = vmul.f32 %v132, %v134
  %v136 = vadd.f32 %v132, %v135
  %vm137 = vweird.f32 %v131
  %vm138 = vweird.f32 %v132
  %vm139 = vmor %vm137, %vm138
  %v140 = vsel %vm139, %v132, %v136
  %v141 = vand.u32 2147483647, %v131
  %vm142 = vcmp.eq.f32.partialorder %v141, 8.507059e+37
  %v143 = vand.u32 %v131, 2147483648
  %v144 = vor.u32 1.1754944e-38, %v143
  %v145 = vsel %vm142, %v144, %v140
  %v146 = vmul.f32 1.0, %v145
  %v147 = vmul.f32 %v127, %v146
  %s148 = scalar_lea.vmem %s2, 48
  %v149 = vld [vmem:[%s148] sm:$0xf]
  %v150 = vld [vmem:[%s148 + $0x4] sm:$0xf]
  %v151 = vld [vmem:[%s148 + $0x8] sm:$0xf]
  %v152 = vld [vmem:[%s148 + $0xc] sm:$0xf]
  %v153 = vpack.c.bf16 %v147, %v147
  %v158 = vunpack.c.l.b16 %v149
  %v159 = vunpack.c.l.b16 %v150
  %v160 = vunpack.c.l.b16 %v151
  %v161 = vunpack.c.l.b16 %v152
  %v162 = vpack.c.b16 %v159, %v158
  %v163 = vpack.c.b16 %v161, %v160
  %167 = vrot.lane.b32.xlu0 %v73, 96
  %v168 = vpop.permute.xlu0 %167
  %v171 = vsel %vm59, %v153, 0
  %173 = vmatpush.bf16.msra.mxu0 0
  %174 = vmatpush.bf16.msra.mxu0 0
  %175 = vmatpush.bf16.msra.mxu0 0
  %176 = vmatpush.bf16.msra.mxu0 0
  %177 = vmatpush.bf16.msra.mxu0 0
  %178 = vmatpush.bf16.msra.mxu0 0
  %179 = vmatpush.bf16.msra.mxu0 %v163
  %180 = vmatpush.bf16.msra.mxu0 %v162
  %181 = vmatmul.bf16.gmra.mxu0 %v171
  %v182 = vpop.f32.mrf.mxu0
  %v183 = vadd.f32 %v168, %v182
  %v184 = vpop.f32.mrf.mxu0
  %185 = vdwg.mxu0
  %s186 = scalar_lea.vmem %s3, 3
  %v187 = vld [vmem:[%s186] sm:$0x1]
  %v189 = vperm.slane %v187, 0
  %v191 = vadd.f32 %v183, %v189
  %v192 = vxor.u32 %v191, 2147483648
  %v193 = vmul.f32 %v192, 1.442695
  %v194 = vpow.pop %v193
  %v195 = vadd.f32 %v194, 1.0
  %v196 = vrcp.pop %v195
  %v197 = vmul.f32 %v195, %v196
  %v198 = vsub.f32 1.0, %v197
  %v199 = vmul.f32 %v196, %v198
  %v200 = vadd.f32 %v196, %v199
  %vm201 = vweird.f32 %v195
  %vm202 = vweird.f32 %v196
  %vm203 = vmor %vm201, %vm202
  %v204 = vsel %vm203, %v196, %v200
  %v205 = vand.u32 2147483647, %v195
  %vm206 = vcmp.eq.f32.partialorder %v205, 8.507059e+37
  %v207 = vand.u32 %v195, 2147483648
  %v208 = vor.u32 1.1754944e-38, %v207
  %v209 = vsel %vm206, %v208, %v204
  %v210 = vmul.f32 1.0, %v209
  %v211 = vmul.f32 %v191, %v210
  %213 = vrot.lane.b32.xlu0 %v211, 32
  %v214 = vpop.permute.xlu0 %213
  %v216 = vsel %vm59, %v147, %v214
  %v217 = vld [vmem:[%s5] sm:$0xf]
  %v218 = vld [vmem:[%s5 + $0x4] sm:$0xf]
  %v219 = vld [vmem:[%s5 + $0x8] sm:$0xf]
  %v220 = vld [vmem:[%s5 + $0xc] sm:$0xf]
  %v221 = vld [vmem:[%s5 + $0x10] sm:$0xf]
  %v222 = vld [vmem:[%s5 + $0x14] sm:$0xf]
  %v223 = vld [vmem:[%s5 + $0x18] sm:$0xf]
  %v224 = vld [vmem:[%s5 + $0x1c] sm:$0xf]
  %v225 = vpack.c.bf16 %v216, %v216
  %v226 = vld [vmem:[%s6] sm:$0x1]
  %v228 = vperm.slane %v226, 0
  %v238 = vunpack.c.l.b16 %v217
  %v239 = vunpack.c.l.b16 %v218
  %v240 = vunpack.c.l.b16 %v219
  %v241 = vunpack.c.l.b16 %v220
  %v242 = vunpack.c.l.b16 %v221
  %v243 = vunpack.c.l.b16 %v222
  %v244 = vunpack.c.l.b16 %v223
  %v245 = vunpack.c.l.b16 %v224
  %v246 = vpack.c.b16 %v239, %v238
  %v247 = vpack.c.b16 %v241, %v240
  %v248 = vpack.c.b16 %v243, %v242
  %v249 = vpack.c.b16 %v245, %v244
  %vm254 = vcmask 523264
  %v256 = vsel %vm254, %v225, 0
  %258 = vmatpush.bf16.msra.mxu0 0
  %259 = vmatpush.bf16.msra.mxu0 0
  %260 = vmatpush.bf16.msra.mxu0 0
  %261 = vmatpush.bf16.msra.mxu0 0
  %262 = vmatpush.bf16.msra.mxu0 %v249
  %263 = vmatpush.bf16.msra.mxu0 %v248
  %264 = vmatpush.bf16.msra.mxu0 %v247
  %265 = vmatpush.bf16.msra.mxu0 %v246
  %266 = vmatmul.bf16.gmra.mxu0 %v256
  %v267 = vpop.f32.mrf.mxu0
  %v268 = vadd.f32 %v228, %v267
  %v269 = vpop.f32.mrf.mxu0
  %270 = vdwg.mxu0
  %v271 = vxor.u32 %v268, 2147483648
  %v272 = vmul.f32 %v271, 1.442695
  %v273 = vpow.pop %v272
  %v274 = vadd.f32 %v273, 1.0
  %v275 = vrcp.pop %v274
  %v276 = vmul.f32 %v274, %v275
  %v277 = vsub.f32 1.0, %v276
  %v278 = vmul.f32 %v275, %v277
  %v279 = vadd.f32 %v275, %v278
  %vm280 = vweird.f32 %v274
  %vm281 = vweird.f32 %v275
  %vm282 = vmor %vm280, %vm281
  %v283 = vsel %vm282, %v275, %v279
  %v284 = vand.u32 2147483647, %v274
  %vm285 = vcmp.eq.f32.partialorder %v284, 8.507059e+37
  %v286 = vand.u32 %v274, 2147483648
  %v287 = vor.u32 1.1754944e-38, %v286
  %v288 = vsel %vm285, %v287, %v283
  %v289 = vmul.f32 1.0, %v288
  %v290 = vmul.f32 %v268, %v289
  %s291 = scalar_lea.vmem %s5, 32
  %v292 = vld [vmem:[%s291] sm:$0xf]
  %v293 = vld [vmem:[%s291 + $0x4] sm:$0xf]
  %v294 = vld [vmem:[%s291 + $0x8] sm:$0xf]
  %v295 = vld [vmem:[%s291 + $0xc] sm:$0xf]
  %v296 = vld [vmem:[%s291 + $0x10] sm:$0xf]
  %v297 = vld [vmem:[%s291 + $0x14] sm:$0xf]
  %v298 = vld [vmem:[%s291 + $0x18] sm:$0xf]
  %v299 = vld [vmem:[%s291 + $0x1c] sm:$0xf]
  %v300 = vpack.c.bf16 %v290, %v290
  %s301 = scalar_lea.vmem %s6, 1
  %v302 = vld [vmem:[%s301] sm:$0x1]
  %v304 = vperm.slane %v302, 0
  %v314 = vunpack.c.l.b16 %v292
  %v315 = vunpack.c.l.b16 %v293
  %v316 = vunpack.c.l.b16 %v294
  %v317 = vunpack.c.l.b16 %v295
  %v318 = vunpack.c.l.b16 %v296
  %v319 = vunpack.c.l.b16 %v297
  %v320 = vunpack.c.l.b16 %v298
  %v321 = vunpack.c.l.b16 %v299
  %v322 = vpack.c.b16 %v315, %v314
  %v323 = vpack.c.b16 %v317, %v316
  %v324 = vpack.c.b16 %v319, %v318
  %v325 = vpack.c.b16 %v321, %v320
  %v331 = vsel %vm254, %v300, 0
  %333 = vmatpush.bf16.msra.mxu0 0
  %334 = vmatpush.bf16.msra.mxu0 0
  %335 = vmatpush.bf16.msra.mxu0 0
  %336 = vmatpush.bf16.msra.mxu0 0
  %337 = vmatpush.bf16.msra.mxu0 %v325
  %338 = vmatpush.bf16.msra.mxu0 %v324
  %339 = vmatpush.bf16.msra.mxu0 %v323
  %340 = vmatpush.bf16.msra.mxu0 %v322
  %341 = vmatmul.bf16.gmra.mxu0 %v331
  %v342 = vpop.f32.mrf.mxu0
  %v343 = vadd.f32 %v304, %v342
  %v344 = vpop.f32.mrf.mxu0
  %345 = vdwg.mxu0
  %v346 = vxor.u32 %v343, 2147483648
  %v347 = vmul.f32 %v346, 1.442695
  %v348 = vpow.pop %v347
  %v349 = vadd.f32 %v348, 1.0
  %v350 = vrcp.pop %v349
  %v351 = vmul.f32 %v349, %v350
  %v352 = vsub.f32 1.0, %v351
  %v353 = vmul.f32 %v350, %v352
  %v354 = vadd.f32 %v350, %v353
  %vm355 = vweird.f32 %v349
  %vm356 = vweird.f32 %v350
  %vm357 = vmor %vm355, %vm356
  %v358 = vsel %vm357, %v350, %v354
  %v359 = vand.u32 2147483647, %v349
  %vm360 = vcmp.eq.f32.partialorder %v359, 8.507059e+37
  %v361 = vand.u32 %v349, 2147483648
  %v362 = vor.u32 1.1754944e-38, %v361
  %v363 = vsel %vm360, %v362, %v358
  %v364 = vmul.f32 1.0, %v363
  %v365 = vmul.f32 %v343, %v364
  %v366 = vld [vmem:[%s7] sm:$0xf]
  %v367 = vld [vmem:[%s7 + $0x4] sm:$0xf]
  %v368 = vld [vmem:[%s7 + $0x8] sm:$0xf]
  %v369 = vld [vmem:[%s7 + $0xc] sm:$0xf]
  %v370 = vld [vmem:[%s7 + $0x10] sm:$0xf]
  %v371 = vld [vmem:[%s7 + $0x14] sm:$0xf]
  %v372 = vld [vmem:[%s7 + $0x18] sm:$0xf]
  %v373 = vld [vmem:[%s7 + $0x1c] sm:$0xf]
  %v374 = vpack.c.bf16 %v365, %v365
  %v375 = vld [vmem:[%s8] sm:$0x1]
  %v377 = vperm.slane %v375, 0
  %v387 = vunpack.c.l.b16 %v366
  %v388 = vunpack.c.l.b16 %v367
  %v389 = vunpack.c.l.b16 %v368
  %v390 = vunpack.c.l.b16 %v369
  %v391 = vunpack.c.l.b16 %v370
  %v392 = vunpack.c.l.b16 %v371
  %v393 = vunpack.c.l.b16 %v372
  %v394 = vunpack.c.l.b16 %v373
  %v395 = vpack.c.b16 %v388, %v387
  %v396 = vpack.c.b16 %v390, %v389
  %v397 = vpack.c.b16 %v392, %v391
  %v398 = vpack.c.b16 %v394, %v393
  %v404 = vsel %vm254, %v374, 0
  %406 = vmatpush.bf16.msra.mxu0 0
  %407 = vmatpush.bf16.msra.mxu0 0
  %408 = vmatpush.bf16.msra.mxu0 0
  %409 = vmatpush.bf16.msra.mxu0 0
  %410 = vmatpush.bf16.msra.mxu0 %v398
  %411 = vmatpush.bf16.msra.mxu0 %v397
  %412 = vmatpush.bf16.msra.mxu0 %v396
  %413 = vmatpush.bf16.msra.mxu0 %v395
  %414 = vmatmul.bf16.gmra.mxu0 %v404
  %v415 = vpop.f32.mrf.mxu0
  %v416 = vadd.f32 %v377, %v415
  %v417 = vpop.f32.mrf.mxu0
  %418 = vdwg.mxu0
  %419 = vst [vmem:[%s9] sm:$0xff] %v416
  %s420 = scalar_lea.vmem %s0, 8
  %v421 = vld [vmem:[%s420] sm:$0xff]
  %s422 = scalar_lea.vmem %s2, 16
  %v423 = vld [vmem:[%s422] sm:$0xf]
  %v424 = vld [vmem:[%s422 + $0x4] sm:$0xf]
  %v425 = vld [vmem:[%s422 + $0x8] sm:$0xf]
  %v426 = vld [vmem:[%s422 + $0xc] sm:$0xf]
  %v427 = vpack.c.bf16 %v421, %v421
  %v432 = vunpack.c.l.b16 %v423
  %v433 = vunpack.c.l.b16 %v424
  %v434 = vunpack.c.l.b16 %v425
  %v435 = vunpack.c.l.b16 %v426
  %v436 = vpack.c.b16 %v433, %v432
  %v437 = vpack.c.b16 %v435, %v434
  %440 = vrot.lane.b32.xlu0 %v73, 64
  %v441 = vpop.permute.xlu0 %440
  %v444 = vsel %vm59, %v427, 0
  %446 = vmatpush.bf16.msra.mxu0 0
  %447 = vmatpush.bf16.msra.mxu0 0
  %448 = vmatpush.bf16.msra.mxu0 0
  %449 = vmatpush.bf16.msra.mxu0 0
  %450 = vmatpush.bf16.msra.mxu0 0
  %451 = vmatpush.bf16.msra.mxu0 0
  %452 = vmatpush.bf16.msra.mxu0 %v437
  %453 = vmatpush.bf16.msra.mxu0 %v436
  %454 = vmatmul.bf16.gmra.mxu0 %v444
  %v455 = vpop.f32.mrf.mxu0
  %v456 = vadd.f32 %v441, %v455
  %v457 = vpop.f32.mrf.mxu0
  %458 = vdwg.mxu0
  %s459 = scalar_lea.vmem %s3, 1
  %v460 = vld [vmem:[%s459] sm:$0x1]
  %v462 = vperm.slane %v460, 0
  %v464 = vadd.f32 %v456, %v462
  %v465 = vxor.u32 %v464, 2147483648
  %v466 = vmul.f32 %v465, 1.442695
  %v467 = vpow.pop %v466
  %v468 = vadd.f32 %v467, 1.0
  %v469 = vrcp.pop %v468
  %v470 = vmul.f32 %v468, %v469
  %v471 = vsub.f32 1.0, %v470
  %v472 = vmul.f32 %v469, %v471
  %v473 = vadd.f32 %v469, %v472
  %vm474 = vweird.f32 %v468
  %vm475 = vweird.f32 %v469
  %vm476 = vmor %vm474, %vm475
  %v477 = vsel %vm476, %v469, %v473
  %v478 = vand.u32 2147483647, %v468
  %vm479 = vcmp.eq.f32.partialorder %v478, 8.507059e+37
  %v480 = vand.u32 %v468, 2147483648
  %v481 = vor.u32 1.1754944e-38, %v480
  %v482 = vsel %vm479, %v481, %v477
  %v483 = vmul.f32 1.0, %v482
  %v484 = vmul.f32 %v464, %v483
  %s485 = scalar_lea.vmem %s2, 64
  %v486 = vld [vmem:[%s485] sm:$0xf]
  %v487 = vld [vmem:[%s485 + $0x4] sm:$0xf]
  %v488 = vld [vmem:[%s485 + $0x8] sm:$0xf]
  %v489 = vld [vmem:[%s485 + $0xc] sm:$0xf]
  %v490 = vpack.c.bf16 %v484, %v484
  %v495 = vunpack.c.l.b16 %v486
  %v496 = vunpack.c.l.b16 %v487
  %v497 = vunpack.c.l.b16 %v488
  %v498 = vunpack.c.l.b16 %v489
  %v499 = vpack.c.b16 %v496, %v495
  %v500 = vpack.c.b16 %v498, %v497
  %503 = vrot.lane.b32.xlu0 %v73, 32
  %v504 = vpop.permute.xlu0 %503
  %v507 = vsel %vm59, %v490, 0
  %509 = vmatpush.bf16.msra.mxu0 0
  %510 = vmatpush.bf16.msra.mxu0 0
  %511 = vmatpush.bf16.msra.mxu0 0
  %512 = vmatpush.bf16.msra.mxu0 0
  %513 = vmatpush.bf16.msra.mxu0 0
  %514 = vmatpush.bf16.msra.mxu0 0
  %515 = vmatpush.bf16.msra.mxu0 %v500
  %516 = vmatpush.bf16.msra.mxu0 %v499
  %517 = vmatmul.bf16.gmra.mxu0 %v507
  %v518 = vpop.f32.mrf.mxu0
  %v519 = vadd.f32 %v504, %v518
  %v520 = vpop.f32.mrf.mxu0
  %521 = vdwg.mxu0
  %s522 = scalar_lea.vmem %s3, 4
  %v523 = vld [vmem:[%s522] sm:$0x1]
  %v525 = vperm.slane %v523, 0
  %v527 = vadd.f32 %v519, %v525
  %v528 = vxor.u32 %v527, 2147483648
  %v529 = vmul.f32 %v528, 1.442695
  %v530 = vpow.pop %v529
  %v531 = vadd.f32 %v530, 1.0
  %v532 = vrcp.pop %v531
  %v533 = vmul.f32 %v531, %v532
  %v534 = vsub.f32 1.0, %v533
  %v535 = vmul.f32 %v532, %v534
  %v536 = vadd.f32 %v532, %v535
  %vm537 = vweird.f32 %v531
  %vm538 = vweird.f32 %v532
  %vm539 = vmor %vm537, %vm538
  %v540 = vsel %vm539, %v532, %v536
  %v541 = vand.u32 2147483647, %v531
  %vm542 = vcmp.eq.f32.partialorder %v541, 8.507059e+37
  %v543 = vand.u32 %v531, 2147483648
  %v544 = vor.u32 1.1754944e-38, %v543
  %v545 = vsel %vm542, %v544, %v540
  %v546 = vmul.f32 1.0, %v545
  %v547 = vmul.f32 %v527, %v546
  %549 = vrot.lane.b32.xlu0 %v547, 32
  %v550 = vpop.permute.xlu0 %549
  %v552 = vsel %vm59, %v484, %v550
  %s553 = scalar_lea.vmem %s5, 64
  %v554 = vld [vmem:[%s553] sm:$0xf]
  %v555 = vld [vmem:[%s553 + $0x4] sm:$0xf]
  %v556 = vld [vmem:[%s553 + $0x8] sm:$0xf]
  %v557 = vld [vmem:[%s553 + $0xc] sm:$0xf]
  %v558 = vld [vmem:[%s553 + $0x10] sm:$0xf]
  %v559 = vld [vmem:[%s553 + $0x14] sm:$0xf]
  %v560 = vld [vmem:[%s553 + $0x18] sm:$0xf]
  %v561 = vld [vmem:[%s553 + $0x1c] sm:$0xf]
  %v562 = vpack.c.bf16 %v552, %v552
  %s563 = scalar_lea.vmem %s6, 2
  %v564 = vld [vmem:[%s563] sm:$0x1]
  %v566 = vperm.slane %v564, 0
  %v576 = vunpack.c.l.b16 %v554
  %v577 = vunpack.c.l.b16 %v555
  %v578 = vunpack.c.l.b16 %v556
  %v579 = vunpack.c.l.b16 %v557
  %v580 = vunpack.c.l.b16 %v558
  %v581 = vunpack.c.l.b16 %v559
  %v582 = vunpack.c.l.b16 %v560
  %v583 = vunpack.c.l.b16 %v561
  %v584 = vpack.c.b16 %v577, %v576
  %v585 = vpack.c.b16 %v579, %v578
  %v586 = vpack.c.b16 %v581, %v580
  %v587 = vpack.c.b16 %v583, %v582
  %v593 = vsel %vm254, %v562, 0
  %595 = vmatpush.bf16.msra.mxu0 0
  %596 = vmatpush.bf16.msra.mxu0 0
  %597 = vmatpush.bf16.msra.mxu0 0
  %598 = vmatpush.bf16.msra.mxu0 0
  %599 = vmatpush.bf16.msra.mxu0 %v587
  %600 = vmatpush.bf16.msra.mxu0 %v586
  %601 = vmatpush.bf16.msra.mxu0 %v585
  %602 = vmatpush.bf16.msra.mxu0 %v584
  %603 = vmatmul.bf16.gmra.mxu0 %v593
  %v604 = vpop.f32.mrf.mxu0
  %v605 = vadd.f32 %v566, %v604
  %v606 = vpop.f32.mrf.mxu0
  %607 = vdwg.mxu0
  %v608 = vxor.u32 %v605, 2147483648
  %v609 = vmul.f32 %v608, 1.442695
  %v610 = vpow.pop %v609
  %v611 = vadd.f32 %v610, 1.0
  %v612 = vrcp.pop %v611
  %v613 = vmul.f32 %v611, %v612
  %v614 = vsub.f32 1.0, %v613
  %v615 = vmul.f32 %v612, %v614
  %v616 = vadd.f32 %v612, %v615
  %vm617 = vweird.f32 %v611
  %vm618 = vweird.f32 %v612
  %vm619 = vmor %vm617, %vm618
  %v620 = vsel %vm619, %v612, %v616
  %v621 = vand.u32 2147483647, %v611
  %vm622 = vcmp.eq.f32.partialorder %v621, 8.507059e+37
  %v623 = vand.u32 %v611, 2147483648
  %v624 = vor.u32 1.1754944e-38, %v623
  %v625 = vsel %vm622, %v624, %v620
  %v626 = vmul.f32 1.0, %v625
  %v627 = vmul.f32 %v605, %v626
  %s628 = scalar_lea.vmem %s5, 96
  %v629 = vld [vmem:[%s628] sm:$0xf]
  %v630 = vld [vmem:[%s628 + $0x4] sm:$0xf]
  %v631 = vld [vmem:[%s628 + $0x8] sm:$0xf]
  %v632 = vld [vmem:[%s628 + $0xc] sm:$0xf]
  %v633 = vld [vmem:[%s628 + $0x10] sm:$0xf]
  %v634 = vld [vmem:[%s628 + $0x14] sm:$0xf]
  %v635 = vld [vmem:[%s628 + $0x18] sm:$0xf]
  %v636 = vld [vmem:[%s628 + $0x1c] sm:$0xf]
  %v637 = vpack.c.bf16 %v627, %v627
  %s638 = scalar_lea.vmem %s6, 3
  %v639 = vld [vmem:[%s638] sm:$0x1]
  %v641 = vperm.slane %v639, 0
  %v651 = vunpack.c.l.b16 %v629
  %v652 = vunpack.c.l.b16 %v630
  %v653 = vunpack.c.l.b16 %v631
  %v654 = vunpack.c.l.b16 %v632
  %v655 = vunpack.c.l.b16 %v633
  %v656 = vunpack.c.l.b16 %v634
  %v657 = vunpack.c.l.b16 %v635
  %v658 = vunpack.c.l.b16 %v636
  %v659 = vpack.c.b16 %v652, %v651
  %v660 = vpack.c.b16 %v654, %v653
  %v661 = vpack.c.b16 %v656, %v655
  %v662 = vpack.c.b16 %v658, %v657
  %v668 = vsel %vm254, %v637, 0
  %670 = vmatpush.bf16.msra.mxu0 0
  %671 = vmatpush.bf16.msra.mxu0 0
  %672 = vmatpush.bf16.msra.mxu0 0
  %673 = vmatpush.bf16.msra.mxu0 0
  %674 = vmatpush.bf16.msra.mxu0 %v662
  %675 = vmatpush.bf16.msra.mxu0 %v661
  %676 = vmatpush.bf16.msra.mxu0 %v660
  %677 = vmatpush.bf16.msra.mxu0 %v659
  %678 = vmatmul.bf16.gmra.mxu0 %v668
  %v679 = vpop.f32.mrf.mxu0
  %v680 = vadd.f32 %v641, %v679
  %v681 = vpop.f32.mrf.mxu0
  %682 = vdwg.mxu0
  %v683 = vxor.u32 %v680, 2147483648
  %v684 = vmul.f32 %v683, 1.442695
  %v685 = vpow.pop %v684
  %v686 = vadd.f32 %v685, 1.0
  %v687 = vrcp.pop %v686
  %v688 = vmul.f32 %v686, %v687
  %v689 = vsub.f32 1.0, %v688
  %v690 = vmul.f32 %v687, %v689
  %v691 = vadd.f32 %v687, %v690
  %vm692 = vweird.f32 %v686
  %vm693 = vweird.f32 %v687
  %vm694 = vmor %vm692, %vm693
  %v695 = vsel %vm694, %v687, %v691
  %v696 = vand.u32 2147483647, %v686
  %vm697 = vcmp.eq.f32.partialorder %v696, 8.507059e+37
  %v698 = vand.u32 %v686, 2147483648
  %v699 = vor.u32 1.1754944e-38, %v698
  %v700 = vsel %vm697, %v699, %v695
  %v701 = vmul.f32 1.0, %v700
  %v702 = vmul.f32 %v680, %v701
  %s703 = scalar_lea.vmem %s7, 32
  %v704 = vld [vmem:[%s703] sm:$0xf]
  %v705 = vld [vmem:[%s703 + $0x4] sm:$0xf]
  %v706 = vld [vmem:[%s703 + $0x8] sm:$0xf]
  %v707 = vld [vmem:[%s703 + $0xc] sm:$0xf]
  %v708 = vld [vmem:[%s703 + $0x10] sm:$0xf]
  %v709 = vld [vmem:[%s703 + $0x14] sm:$0xf]
  %v710 = vld [vmem:[%s703 + $0x18] sm:$0xf]
  %v711 = vld [vmem:[%s703 + $0x1c] sm:$0xf]
  %v712 = vpack.c.bf16 %v702, %v702
  %s713 = scalar_lea.vmem %s8, 1
  %v714 = vld [vmem:[%s713] sm:$0x1]
  %v716 = vperm.slane %v714, 0
  %v726 = vunpack.c.l.b16 %v704
  %v727 = vunpack.c.l.b16 %v705
  %v728 = vunpack.c.l.b16 %v706
  %v729 = vunpack.c.l.b16 %v707
  %v730 = vunpack.c.l.b16 %v708
  %v731 = vunpack.c.l.b16 %v709
  %v732 = vunpack.c.l.b16 %v710
  %v733 = vunpack.c.l.b16 %v711
  %v734 = vpack.c.b16 %v727, %v726
  %v735 = vpack.c.b16 %v729, %v728
  %v736 = vpack.c.b16 %v731, %v730
  %v737 = vpack.c.b16 %v733, %v732
  %v743 = vsel %vm254, %v712, 0
  %745 = vmatpush.bf16.msra.mxu0 0
  %746 = vmatpush.bf16.msra.mxu0 0
  %747 = vmatpush.bf16.msra.mxu0 0
  %748 = vmatpush.bf16.msra.mxu0 0
  %749 = vmatpush.bf16.msra.mxu0 %v737
  %750 = vmatpush.bf16.msra.mxu0 %v736
  %751 = vmatpush.bf16.msra.mxu0 %v735
  %752 = vmatpush.bf16.msra.mxu0 %v734
  %753 = vmatmul.bf16.gmra.mxu0 %v743
  %v754 = vpop.f32.mrf.mxu0
  %v755 = vadd.f32 %v716, %v754
  %v756 = vpop.f32.mrf.mxu0
  %757 = vdwg.mxu0
  %s758 = scalar_lea.vmem %s9, 8
  %759 = vst [vmem:[%s758] sm:$0xff] %v755
  %s760 = scalar_lea.vmem %s0, 16
  %v761 = vld [vmem:[%s760] sm:$0xff]
  %s762 = scalar_lea.vmem %s2, 32
  %v763 = vld [vmem:[%s762] sm:$0xf]
  %v764 = vld [vmem:[%s762 + $0x4] sm:$0xf]
  %v765 = vld [vmem:[%s762 + $0x8] sm:$0xf]
  %v766 = vld [vmem:[%s762 + $0xc] sm:$0xf]
  %v767 = vpack.c.bf16 %v761, %v761
  %v772 = vunpack.c.l.b16 %v763
  %v773 = vunpack.c.l.b16 %v764
  %v774 = vunpack.c.l.b16 %v765
  %v775 = vunpack.c.l.b16 %v766
  %v776 = vpack.c.b16 %v773, %v772
  %v777 = vpack.c.b16 %v775, %v774
  %v781 = vsel %vm59, %v767, 0
  %783 = vmatpush.bf16.msra.mxu0 0
  %784 = vmatpush.bf16.msra.mxu0 0
  %785 = vmatpush.bf16.msra.mxu0 0
  %786 = vmatpush.bf16.msra.mxu0 0
  %787 = vmatpush.bf16.msra.mxu0 0
  %788 = vmatpush.bf16.msra.mxu0 0
  %789 = vmatpush.bf16.msra.mxu0 %v777
  %790 = vmatpush.bf16.msra.mxu0 %v776
  %791 = vmatmul.bf16.gmra.mxu0 %v781
  %v792 = vpop.f32.mrf.mxu0
  %v793 = vadd.f32 %v86, %v792
  %v794 = vpop.f32.mrf.mxu0
  %795 = vdwg.mxu0
  %s796 = scalar_lea.vmem %s3, 2
  %v797 = vld [vmem:[%s796] sm:$0x1]
  %v799 = vperm.slane %v797, 0
  %v801 = vadd.f32 %v793, %v799
  %v802 = vxor.u32 %v801, 2147483648
  %v803 = vmul.f32 %v802, 1.442695
  %v804 = vpow.pop %v803
  %v805 = vadd.f32 %v804, 1.0
  %v806 = vrcp.pop %v805
  %v807 = vmul.f32 %v805, %v806
  %v808 = vsub.f32 1.0, %v807
  %v809 = vmul.f32 %v806, %v808
  %v810 = vadd.f32 %v806, %v809
  %vm811 = vweird.f32 %v805
  %vm812 = vweird.f32 %v806
  %vm813 = vmor %vm811, %vm812
  %v814 = vsel %vm813, %v806, %v810
  %v815 = vand.u32 2147483647, %v805
  %vm816 = vcmp.eq.f32.partialorder %v815, 8.507059e+37
  %v817 = vand.u32 %v805, 2147483648
  %v818 = vor.u32 1.1754944e-38, %v817
  %v819 = vsel %vm816, %v818, %v814
  %v820 = vmul.f32 1.0, %v819
  %v821 = vmul.f32 %v801, %v820
  %s822 = scalar_lea.vmem %s2, 80
  %v823 = vld [vmem:[%s822] sm:$0xf]
  %v824 = vld [vmem:[%s822 + $0x4] sm:$0xf]
  %v825 = vld [vmem:[%s822 + $0x8] sm:$0xf]
  %v826 = vld [vmem:[%s822 + $0xc] sm:$0xf]
  %v827 = vpack.c.bf16 %v821, %v821
  %v832 = vunpack.c.l.b16 %v823
  %v833 = vunpack.c.l.b16 %v824
  %v834 = vunpack.c.l.b16 %v825
  %v835 = vunpack.c.l.b16 %v826
  %v836 = vpack.c.b16 %v833, %v832
  %v837 = vpack.c.b16 %v835, %v834
  %841 = vrot.lane.b32.xlu0 %v86, 96
  %v842 = vpop.permute.xlu0 %841
  %v845 = vsel %vm59, %v827, 0
  %847 = vmatpush.bf16.msra.mxu0 0
  %848 = vmatpush.bf16.msra.mxu0 0
  %849 = vmatpush.bf16.msra.mxu0 0
  %850 = vmatpush.bf16.msra.mxu0 0
  %851 = vmatpush.bf16.msra.mxu0 0
  %852 = vmatpush.bf16.msra.mxu0 0
  %853 = vmatpush.bf16.msra.mxu0 %v837
  %854 = vmatpush.bf16.msra.mxu0 %v836
  %855 = vmatmul.bf16.gmra.mxu0 %v845
  %v856 = vpop.f32.mrf.mxu0
  %v857 = vadd.f32 %v842, %v856
  %v858 = vpop.f32.mrf.mxu0
  %859 = vdwg.mxu0
  %s860 = scalar_lea.vmem %s3, 5
  %v861 = vld [vmem:[%s860] sm:$0x1]
  %v863 = vperm.slane %v861, 0
  %v865 = vadd.f32 %v857, %v863
  %v866 = vxor.u32 %v865, 2147483648
  %v867 = vmul.f32 %v866, 1.442695
  %v868 = vpow.pop %v867
  %v869 = vadd.f32 %v868, 1.0
  %v870 = vrcp.pop %v869
  %v871 = vmul.f32 %v869, %v870
  %v872 = vsub.f32 1.0, %v871
  %v873 = vmul.f32 %v870, %v872
  %v874 = vadd.f32 %v870, %v873
  %vm875 = vweird.f32 %v869
  %vm876 = vweird.f32 %v870
  %vm877 = vmor %vm875, %vm876
  %v878 = vsel %vm877, %v870, %v874
  %v879 = vand.u32 2147483647, %v869
  %vm880 = vcmp.eq.f32.partialorder %v879, 8.507059e+37
  %v881 = vand.u32 %v869, 2147483648
  %v882 = vor.u32 1.1754944e-38, %v881
  %v883 = vsel %vm880, %v882, %v878
  %v884 = vmul.f32 1.0, %v883
  %v885 = vmul.f32 %v865, %v884
  %887 = vrot.lane.b32.xlu0 %v885, 32
  %v888 = vpop.permute.xlu0 %887
  %v890 = vsel %vm59, %v821, %v888
  %s891 = scalar_lea.vmem %s5, 128
  %v892 = vld [vmem:[%s891] sm:$0xf]
  %v893 = vld [vmem:[%s891 + $0x4] sm:$0xf]
  %v894 = vld [vmem:[%s891 + $0x8] sm:$0xf]
  %v895 = vld [vmem:[%s891 + $0xc] sm:$0xf]
  %v896 = vld [vmem:[%s891 + $0x10] sm:$0xf]
  %v897 = vld [vmem:[%s891 + $0x14] sm:$0xf]
  %v898 = vld [vmem:[%s891 + $0x18] sm:$0xf]
  %v899 = vld [vmem:[%s891 + $0x1c] sm:$0xf]
  %v900 = vpack.c.bf16 %v890, %v890
  %s901 = scalar_lea.vmem %s6, 4
  %v902 = vld [vmem:[%s901] sm:$0x1]
  %v904 = vperm.slane %v902, 0
  %v914 = vunpack.c.l.b16 %v892
  %v915 = vunpack.c.l.b16 %v893
  %v916 = vunpack.c.l.b16 %v894
  %v917 = vunpack.c.l.b16 %v895
  %v918 = vunpack.c.l.b16 %v896
  %v919 = vunpack.c.l.b16 %v897
  %v920 = vunpack.c.l.b16 %v898
  %v921 = vunpack.c.l.b16 %v899
  %v922 = vpack.c.b16 %v915, %v914
  %v923 = vpack.c.b16 %v917, %v916
  %v924 = vpack.c.b16 %v919, %v918
  %v925 = vpack.c.b16 %v921, %v920
  %v931 = vsel %vm254, %v900, 0
  %933 = vmatpush.bf16.msra.mxu0 0
  %934 = vmatpush.bf16.msra.mxu0 0
  %935 = vmatpush.bf16.msra.mxu0 0
  %936 = vmatpush.bf16.msra.mxu0 0
  %937 = vmatpush.bf16.msra.mxu0 %v925
  %938 = vmatpush.bf16.msra.mxu0 %v924
  %939 = vmatpush.bf16.msra.mxu0 %v923
  %940 = vmatpush.bf16.msra.mxu0 %v922
  %941 = vmatmul.bf16.gmra.mxu0 %v931
  %v942 = vpop.f32.mrf.mxu0
  %v943 = vadd.f32 %v904, %v942
  %v944 = vpop.f32.mrf.mxu0
  %945 = vdwg.mxu0
  %v946 = vxor.u32 %v943, 2147483648
  %v947 = vmul.f32 %v946, 1.442695
  %v948 = vpow.pop %v947
  %v949 = vadd.f32 %v948, 1.0
  %v950 = vrcp.pop %v949
  %v951 = vmul.f32 %v949, %v950
  %v952 = vsub.f32 1.0, %v951
  %v953 = vmul.f32 %v950, %v952
  %v954 = vadd.f32 %v950, %v953
  %vm955 = vweird.f32 %v949
  %vm956 = vweird.f32 %v950
  %vm957 = vmor %vm955, %vm956
  %v958 = vsel %vm957, %v950, %v954
  %v959 = vand.u32 2147483647, %v949
  %vm960 = vcmp.eq.f32.partialorder %v959, 8.507059e+37
  %v961 = vand.u32 %v949, 2147483648
  %v962 = vor.u32 1.1754944e-38, %v961
  %v963 = vsel %vm960, %v962, %v958
  %v964 = vmul.f32 1.0, %v963
  %v965 = vmul.f32 %v943, %v964
  %s966 = scalar_lea.vmem %s5, 160
  %v967 = vld [vmem:[%s966] sm:$0xf]
  %v968 = vld [vmem:[%s966 + $0x4] sm:$0xf]
  %v969 = vld [vmem:[%s966 + $0x8] sm:$0xf]
  %v970 = vld [vmem:[%s966 + $0xc] sm:$0xf]
  %v971 = vld [vmem:[%s966 + $0x10] sm:$0xf]
  %v972 = vld [vmem:[%s966 + $0x14] sm:$0xf]
  %v973 = vld [vmem:[%s966 + $0x18] sm:$0xf]
  %v974 = vld [vmem:[%s966 + $0x1c] sm:$0xf]
  %v975 = vpack.c.bf16 %v965, %v965
  %s976 = scalar_lea.vmem %s6, 5
  %v977 = vld [vmem:[%s976] sm:$0x1]
  %v979 = vperm.slane %v977, 0
  %v989 = vunpack.c.l.b16 %v967
  %v990 = vunpack.c.l.b16 %v968
  %v991 = vunpack.c.l.b16 %v969
  %v992 = vunpack.c.l.b16 %v970
  %v993 = vunpack.c.l.b16 %v971
  %v994 = vunpack.c.l.b16 %v972
  %v995 = vunpack.c.l.b16 %v973
  %v996 = vunpack.c.l.b16 %v974
  %v997 = vpack.c.b16 %v990, %v989
  %v998 = vpack.c.b16 %v992, %v991
  %v999 = vpack.c.b16 %v994, %v993
  %v1000 = vpack.c.b16 %v996, %v995
  %v1006 = vsel %vm254, %v975, 0
  %1008 = vmatpush.bf16.msra.mxu0 0
  %1009 = vmatpush.bf16.msra.mxu0 0
  %1010 = vmatpush.bf16.msra.mxu0 0
  %1011 = vmatpush.bf16.msra.mxu0 0
  %1012 = vmatpush.bf16.msra.mxu0 %v1000
  %1013 = vmatpush.bf16.msra.mxu0 %v999
  %1014 = vmatpush.bf16.msra.mxu0 %v998
  %1015 = vmatpush.bf16.msra.mxu0 %v997
  %1016 = vmatmul.bf16.gmra.mxu0 %v1006
  %v1017 = vpop.f32.mrf.mxu0
  %v1018 = vadd.f32 %v979, %v1017
  %v1019 = vpop.f32.mrf.mxu0
  %1020 = vdwg.mxu0
  %v1021 = vxor.u32 %v1018, 2147483648
  %v1022 = vmul.f32 %v1021, 1.442695
  %v1023 = vpow.pop %v1022
  %v1024 = vadd.f32 %v1023, 1.0
  %v1025 = vrcp.pop %v1024
  %v1026 = vmul.f32 %v1024, %v1025
  %v1027 = vsub.f32 1.0, %v1026
  %v1028 = vmul.f32 %v1025, %v1027
  %v1029 = vadd.f32 %v1025, %v1028
  %vm1030 = vweird.f32 %v1024
  %vm1031 = vweird.f32 %v1025
  %vm1032 = vmor %vm1030, %vm1031
  %v1033 = vsel %vm1032, %v1025, %v1029
  %v1034 = vand.u32 2147483647, %v1024
  %vm1035 = vcmp.eq.f32.partialorder %v1034, 8.507059e+37
  %v1036 = vand.u32 %v1024, 2147483648
  %v1037 = vor.u32 1.1754944e-38, %v1036
  %v1038 = vsel %vm1035, %v1037, %v1033
  %v1039 = vmul.f32 1.0, %v1038
  %v1040 = vmul.f32 %v1018, %v1039
  %s1041 = scalar_lea.vmem %s7, 64
  %v1042 = vld [vmem:[%s1041] sm:$0xf]
  %v1043 = vld [vmem:[%s1041 + $0x4] sm:$0xf]
  %v1044 = vld [vmem:[%s1041 + $0x8] sm:$0xf]
  %v1045 = vld [vmem:[%s1041 + $0xc] sm:$0xf]
  %v1046 = vld [vmem:[%s1041 + $0x10] sm:$0xf]
  %v1047 = vld [vmem:[%s1041 + $0x14] sm:$0xf]
  %v1048 = vld [vmem:[%s1041 + $0x18] sm:$0xf]
  %v1049 = vld [vmem:[%s1041 + $0x1c] sm:$0xf]
  %v1050 = vpack.c.bf16 %v1040, %v1040
  %s1051 = scalar_lea.vmem %s8, 2
  %v1052 = vld [vmem:[%s1051] sm:$0x1]
  %v1054 = vperm.slane %v1052, 0
  %v1064 = vunpack.c.l.b16 %v1042
  %v1065 = vunpack.c.l.b16 %v1043
  %v1066 = vunpack.c.l.b16 %v1044
  %v1067 = vunpack.c.l.b16 %v1045
  %v1068 = vunpack.c.l.b16 %v1046
  %v1069 = vunpack.c.l.b16 %v1047
  %v1070 = vunpack.c.l.b16 %v1048
  %v1071 = vunpack.c.l.b16 %v1049
  %v1072 = vpack.c.b16 %v1065, %v1064
  %v1073 = vpack.c.b16 %v1067, %v1066
  %v1074 = vpack.c.b16 %v1069, %v1068
  %v1075 = vpack.c.b16 %v1071, %v1070
  %v1081 = vsel %vm254, %v1050, 0
  %1083 = vmatpush.bf16.msra.mxu0 0
  %1084 = vmatpush.bf16.msra.mxu0 0
  %1085 = vmatpush.bf16.msra.mxu0 0
  %1086 = vmatpush.bf16.msra.mxu0 0
  %1087 = vmatpush.bf16.msra.mxu0 %v1075
  %1088 = vmatpush.bf16.msra.mxu0 %v1074
  %1089 = vmatpush.bf16.msra.mxu0 %v1073
  %1090 = vmatpush.bf16.msra.mxu0 %v1072
  %1091 = vmatmul.bf16.gmra.mxu0 %v1081
  %v1092 = vpop.f32.mrf.mxu0
  %v1093 = vadd.f32 %v1054, %v1092
  %v1094 = vpop.f32.mrf.mxu0
  %1095 = vdwg.mxu0
  %s1096 = scalar_lea.vmem %s9, 16
  %1097 = vst [vmem:[%s1096] sm:$0xff] %v1093
  // Predicated region
  $region38: #{yowo_forward.1} parent=0 // pred_check
    _
  $region39: #{yowo_forward.1} parent=0 // pred_check_branch
    %1099 = sbr.rel (0) target = $region41
  $region40: #{yowo_forward.1} parent=0 // pred_region
    _
  $region41: #{yowo_forward.1} parent=0 // pred_fallthru
    _
  // Predicated region
  $region42: #{yowo_forward.1} parent=0 // pred_check
    _
  $region43: #{yowo_forward.1} parent=0 // pred_check_branch
    %1101 = sbr.rel (0) target = $region45
  $region44: #{yowo_forward.1} parent=0 // pred_region
    _
  $region45: #{yowo_forward.1} parent=0 // pred_fallthru
    _

</llo_original>
